<compile_context>
chip_gen: v6e
topology: v6e:2x2x1
jax: 0.10.0
libtpu: 0.0.40
codegen_flags: <defaults>
</compile_context>

<pallas_src>
import functools

import jax
import jax.numpy as jnp
from jax import lax
from jax.experimental import pallas as pl
from jax.experimental.pallas import tpu as pltpu


def _softshrink(x, lambd=1.0):
    # F.softshrink(x, l) == x - clip(x, -l, l)   (max + min + sub)
    return x - jnp.clip(x, -lambd, lambd)


def _tap_masks(taps_side, w, h, R):
    """(taps_side**2, R) f32 {0,1} validity planes for 'same' zero padding.

    Flat layout r = b_local*w*h + i*h + j.  A flat shift by du*h + dv is a
    valid in-image read iff 0 <= i+du < w and 0 <= j+dv < h; otherwise the
    shifted lane belongs to another row / image / the halo and must be zeroed.
    """
    p = taps_side // 2
    r = jnp.arange(R, dtype=jnp.int32)
    j = r % h
    i = (r // h) % w
    rows = []
    for u in range(taps_side):
        for v in range(taps_side):
            du, dv = u - p, v - p
            ok = (i + du >= 0) & (i + du < w) & (j + dv >= 0) & (j + dv < h)
            rows.append(ok)
    return jnp.stack(rows).astype(jnp.float32)


def _scn_kernel(y_ref, mT_ref, mH_ref, mG_ref, WH_ref, bWH_ref, S_ref,
                GDx_ref, bT_ref, bG_ref, out_ref, sh_ref, xtaps_ref,
                *, h, sy, sg, k, R, SMAX):
    py, pg = sy // 2, sg // 2
    srows = sh_ref.shape[0]

    # Zero only the lane halo (2*SMAX columns) each step; body lanes are always
    # fully overwritten before being read.  Keeps mask-multiplies NaN-safe.
    if SMAX > 0:
        sh_ref[:, 0:SMAX] = jnp.zeros((srows, SMAX), jnp.float32)
        sh_ref[:, SMAX + R:2 * SMAX + R] = jnp.zeros((srows, SMAX), jnp.float32)

    def window(row, du, dv):
        s = du * h + dv
        return sh_ref[row:row + 1, SMAX + s:SMAX + s + R]        # (1, R)

    # ---------------- T conv: means = T(y) + bT --------------------------------
    y_img = y_ref[0]                                             # (1, R)
    sh_ref[0:1, SMAX:SMAX + R] = y_img
    means = jnp.zeros((1, R), jnp.float32)
    for u in range(sy):
        for v in range(sy):
            t = u * sy + v
            # T tap weight folded into the mask plane -> one mul + add per tap
            means = means + mT_ref[t:t + 1, :] * window(0, u - py, v - py)
    means = means + bT_ref[0]

    # ---------------- masked H taps of x = y - means (K of the fused matmul) ---
    sh_ref[0:1, SMAX:SMAX + R] = y_img - means
    for u in range(sy):
        for v in range(sy):
            t = u * sy + v
            xtaps_ref[t:t + 1, :] = mH_ref[t:t + 1, :] * window(0, u - py, v - py)

    # ---------------- fused W@H, then k softshrink/S iterations (MXU) ----------
    ylin = jnp.dot(WH_ref[...], xtaps_ref[...],
                   preferred_element_type=jnp.float32) + bWH_ref[...]   # (n, R)
    S = S_ref[...]
    z = ylin
    for _ in range(k):
        z = _softshrink(z)
        z = jnp.dot(S, z, preferred_element_type=jnp.float32) + ylin
    z = _softshrink(z)

    # ---------------- fused Dx + G channel contraction, then G spatial taps ----
    zg = jnp.dot(GDx_ref[...], z, preferred_element_type=jnp.float32)   # (sg*sg, R)
    sh_ref[0:sg * sg, SMAX:SMAX + R] = zg
    out = means + bG_ref[0]
    for u in range(sg):
        for v in range(sg):
            t = u * sg + v
            out = out + mG_ref[t:t + 1, :] * window(t, u - pg, v - pg)
    out_ref[0] = out


def _pick_batch_tile(b, wh, *, min_grid=2, max_lanes=8192):
    """Largest batch tile keeping >= min_grid grid steps (megacore + DMA
    pipelining on v7x) and at most max_lanes lanes per step (VMEM bound;
    retune per generation: larger on v5e/v6e's 128 MiB, capped on v7x)."""
    best = 1
    for d in range(1, b + 1):
        if b % d:
            continue
        if d > 1 and d * wh > max_lanes:
            continue
        if b >= min_grid and b // d < min_grid:
            continue
        best = d
    return best


def scn_forward(y, params, cfg):
    """y: (b, 1, w, h) NCHW float32  ->  (b, 1, w, h)."""
    my, sy, n, sg, k = cfg['my'], cfg['sy'], cfg['n'], cfg['sg'], cfg['k']
    mx = cfg['sx'] * cfg['sx']
    b, c, w, h = y.shape
    assert c == 1, "SCN expects single-channel input"
    assert sy % 2 == 1 and sg % 2 == 1, "odd kernel sizes => 'same' padding"

    BT = _pick_batch_tile(b, w * h)
    R = BT * w * h
    # NOTE: R should be a multiple of 128 for lane-dense (unmasked) stores.
    # The kernel stays correct otherwise (Mosaic emits masked partial stores).
    SMAX = max(sy // 2, sg // 2) * (h + 1)

    # lane-dense, batch-blocked view of the input: r = b_local*w*h + i*h + j
    y_tiles = y.astype(jnp.float32).reshape(b // BT, 1, R)

    # precomputed {0,1} tap-validity planes; T weights folded into its planes
    wT = params['T_w'].reshape(sy * sy).astype(jnp.float32)
    maskH = _tap_masks(sy, w, h, R)                              # (sy*sy, R)
    maskT = wT[:, None] * maskH                                  # (sy*sy, R)
    maskG = maskH if sg == sy else _tap_masks(sg, w, h, R)       # (sg*sg, R)

    # ---- fold the linear algebra into a minimal set of kernel weights ---------
    bT = params['T_b'].reshape(1).astype(jnp.float32)
    WH = params['W_w'] @ params['H_w'].reshape(my, sy * sy)      # (n, sy*sy)
    bWH = (params['W_w'] @ params['H_b']).reshape(n, 1)          # (n, 1)
    S = params['S_w']                                            # (n, n)
    GDx = params['G_w'].reshape(mx, sg * sg).T @ params['Dx_w']  # (sg*sg, n)
    bG = params['G_b'].reshape(1).astype(jnp.float32)

    kernel = functools.partial(_scn_kernel, h=h, sy=sy, sg=sg, k=k,
                               R=R, SMAX=SMAX)

    # rough VMEM budget: scratches + double-buffered invariants + intermediates
    est = 4 * R * (sg * sg + sy * sy + 2 * (2 + 2 * sy * sy + sg * sg) + 6 * n)
    vmem_limit = int(min(48 * 2**20, max(16 * 2**20, 2 * est)))

    out = pl.pallas_call(
        kernel,
        out_shape=jax.ShapeDtypeStruct((b // BT, 1, R), jnp.float32),
        grid_spec=pltpu.PrefetchScalarGridSpec(
            num_scalar_prefetch=0,
            grid=(b // BT,),
            in_specs=[
                pl.BlockSpec((1, 1, R), lambda i: (i, 0, 0)),           # y tile
                pl.BlockSpec((sy * sy, R), lambda i: (0, 0)),           # maskT (wT folded)
                pl.BlockSpec((sy * sy, R), lambda i: (0, 0)),           # maskH
                pl.BlockSpec((sg * sg, R), lambda i: (0, 0)),           # maskG
                pl.BlockSpec((n, sy * sy), lambda i: (0, 0)),           # WH
                pl.BlockSpec((n, 1), lambda i: (0, 0)),                 # bWH
                pl.BlockSpec((n, n), lambda i: (0, 0)),                 # S
                pl.BlockSpec((sg * sg, n), lambda i: (0, 0)),           # GDx
                pl.BlockSpec(memory_space=pltpu.MemorySpace.SMEM),      # bT
                pl.BlockSpec(memory_space=pltpu.MemorySpace.SMEM),      # bG
            ],
            out_specs=pl.BlockSpec((1, 1, R), lambda i: (i, 0, 0)),
            scratch_shapes=[
                pltpu.VMEM((sg * sg, R + 2 * SMAX), jnp.float32),  # halo shift scratch
                pltpu.VMEM((sy * sy, R), jnp.float32),             # H-tap matrix (MXU K)
            ],
        ),
        compiler_params=pltpu.CompilerParams(
            dimension_semantics=("parallel",),   # batch tiles are independent
            vmem_limit_bytes=vmem_limit),
    )(y_tiles, maskT, maskH, maskG, WH, bWH, S, GDx, bT, bG)

    return out.reshape(b, 1, w, h)


def init_params(cfg, key):
    """Deterministic surrogate of SCN.__init__ parameter shapes.

    weight_norm layers are a reparameterization: the forward pass only sees the
    effective weight, which we construct directly.  The structured edge-filter
    overwrite of H.weight is replaced by a deterministic random init (values
    are synthetic; shapes match the PyTorch module).
    """
    my, sy, n, sg = cfg['my'], cfg['sy'], cfg['n'], cfg['sg']
    mx = cfg['sx'] * cfg['sx']
    C, L = 5.0, 5.0
    ks = jax.random.split(key, 6)
    Dy = 0.1 * jax.random.normal(ks[0], (my, n), jnp.float32)
    H_w = jax.random.uniform(ks[1], (my, 1, sy, sy), jnp.float32, -0.1, 0.1)
    H_b = 0.05 * jax.random.normal(ks[2], (my,), jnp.float32)
    T_w = jnp.full((1, 1, sy, sy), 1.0 / (sy * sy), jnp.float32)
    T_b = 0.05 * jax.random.normal(ks[3], (1,), jnp.float32)
    G_w = jnp.full((1, mx, sg, sg), 1.0 / (sg * sg), jnp.float32)
    G_b = 0.05 * jax.random.normal(ks[4], (1,), jnp.float32)
    W_w = Dy.T * C                                             # (n, my)
    S_w = jnp.eye(n, dtype=jnp.float32) - Dy.T @ Dy            # (n, n)
    Dx_w = 0.1 * jax.random.normal(ks[5], (mx, n), jnp.float32) / (L * C)
    return dict(T_w=T_w, T_b=T_b, H_w=H_w, H_b=H_b, W_w=W_w, S_w=S_w,
                Dx_w=Dx_w, G_w=G_w, G_b=G_b)


def scn_reference(y, params, cfg):
    """Pure-JAX (XLA) reference mirroring the PyTorch forward, for validation."""
    sy, sg, my, k = cfg['sy'], cfg['sg'], cfg['my'], cfg['k']
    mx = cfg['sx'] * cfg['sx']
    dn = ('NCHW', 'OIHW', 'NCHW')
    pT, pG = sy // 2, sg // 2
    means = lax.conv_general_dilated(y, params['T_w'], (1, 1),
                                     [(pT, pT), (pT, pT)], dimension_numbers=dn)
    means = means + params['T_b'].reshape(1, 1, 1, 1)
    x = y - means
    hx = lax.conv_general_dilated(x, params['H_w'], (1, 1),
                                  [(pT, pT), (pT, pT)], dimension_numbers=dn)
    hx = hx + params['H_b'].reshape(1, my, 1, 1)
    b, c, w, h = hx.shape
    hx = hx.reshape(b, c, w * h).transpose(0, 2, 1)            # (b, w*h, my)
    ylin = hx @ params['W_w'].T
    z = ylin
    for _ in range(k):
        z = _softshrink(z)
        z = z @ params['S_w'].T + ylin
    z = _softshrink(z)
    z = z @ params['Dx_w'].T                                   # (b, w*h, mx)
    z = z.reshape(b, w, h, mx).transpose(0, 3, 1, 2)           # (b, mx, w, h)
    out = lax.conv_general_dilated(z, params['G_w'], (1, 1),
                                   [(pG, pG), (pG, pG)], dimension_numbers=dn)
    out = out + params['G_b'].reshape(1, 1, 1, 1)
    return out + means


if __name__ == "__main__":
    cfg = dict(my=8, sy=3, n=32, sx=4, sg=3, k=4)              # mx = sx*sx = 16
    key = jax.random.PRNGKey(0)
    kp, kx = jax.random.split(key)
    params = init_params(cfg, kp)
    x = jax.random.normal(kx, (2, 1, 16, 16), jnp.float32)

    out = scn_forward(x, params, cfg)
    out = jax.block_until_ready(out)

    ref = scn_reference(x, params, cfg)
    assert out.shape == ref.shape == (2, 1, 16, 16)
    err = float(jnp.max(jnp.abs(out - ref)))
    if not (err < 1e-3):
        raise AssertionError(f"kernel/reference mismatch, max abs err = {err}")
    print("KERNEL_OK")
</pallas_src>

<mosaic_0001>
module attributes {stable_mosaic.version = 11 : i64} {
  func.func @_scn_kernel(%arg0: i32, %arg1: memref<1x1x256xf32, #tpu.memory_space<vmem>>, %arg2: memref<9x256xf32, #tpu.memory_space<vmem>>, %arg3: memref<9x256xf32, #tpu.memory_space<vmem>>, %arg4: memref<9x256xf32, #tpu.memory_space<vmem>>, %arg5: memref<32x9xf32, #tpu.memory_space<vmem>>, %arg6: memref<32x1xf32, #tpu.memory_space<vmem>>, %arg7: memref<32x32xf32, #tpu.memory_space<vmem>>, %arg8: memref<9x32xf32, #tpu.memory_space<vmem>>, %arg9: memref<1xf32, #tpu.memory_space<smem>>, %arg10: memref<1xf32, #tpu.memory_space<smem>>, %arg11: memref<1x1x256xf32, #tpu.memory_space<vmem>>, %arg12: memref<9x290xf32, #tpu.memory_space<vmem>>, %arg13: memref<9x256xf32, #tpu.memory_space<vmem>>) attributes {dimension_semantics = [#tpu.dimension_semantics<parallel>], iteration_bounds = array<i64: 2>, scalar_prefetch = 0 : i64, scratch_operands = 2 : i64, tpu.core_type = #tpu.core_type<tc>, window_params = [{transform_indices = @transform_0, window_bounds = array<i64: 1, 1, 256>}, {pipeline_mode = #tpu.pipeline_mode<synchronous>, transform_indices = @transform_1, window_bounds = array<i64: 9, 256>}, {pipeline_mode = #tpu.pipeline_mode<synchronous>, transform_indices = @transform_2, window_bounds = array<i64: 9, 256>}, {pipeline_mode = #tpu.pipeline_mode<synchronous>, transform_indices = @transform_3, window_bounds = array<i64: 9, 256>}, {pipeline_mode = #tpu.pipeline_mode<synchronous>, transform_indices = @transform_4, window_bounds = array<i64: 32, 9>}, {pipeline_mode = #tpu.pipeline_mode<synchronous>, transform_indices = @transform_5, window_bounds = array<i64: 32, 1>}, {pipeline_mode = #tpu.pipeline_mode<synchronous>, transform_indices = @transform_6, window_bounds = array<i64: 32, 32>}, {pipeline_mode = #tpu.pipeline_mode<synchronous>, transform_indices = @transform_7, window_bounds = array<i64: 9, 32>}, {transform_indices = @transform_8, window_bounds = array<i64: 1>}, {transform_indices = @transform_9, window_bounds = array<i64: 1>}, {transform_indices = @transform_10, window_bounds = array<i64: 1, 1, 256>}]} {
    %cst = arith.constant 0.000000e+00 : f32
    %0 = vector.broadcast %cst : f32 to vector<9x17xf32>
    %c0 = arith.constant 0 : index
    %c0_0 = arith.constant 0 : index
    %1 = vector.load %arg12[%c0, %c0_0] : memref<9x290xf32, #tpu.memory_space<vmem>>, vector<9x17xf32>
    tpu.vector_store %arg12[%c0, %c0_0], %0 {strides = array<i32>} : memref<9x290xf32, #tpu.memory_space<vmem>>, vector<9x17xf32>,
    %cst_1 = arith.constant 0.000000e+00 : f32
    %2 = vector.broadcast %cst_1 : f32 to vector<9x17xf32>
    %c0_2 = arith.constant 0 : index
    %c273 = arith.constant 273 : index
    %3 = vector.load %arg12[%c0_2, %c273] : memref<9x290xf32, #tpu.memory_space<vmem>>, vector<9x17xf32>
    tpu.vector_store %arg12[%c0_2, %c273], %2 {strides = array<i32>} : memref<9x290xf32, #tpu.memory_space<vmem>>, vector<9x17xf32>,
    %c0_3 = arith.constant 0 : index
    %c0_4 = arith.constant 0 : index
    %c0_5 = arith.constant 0 : index
    %4 = vector.load %arg1[%c0_3, %c0_4, %c0_5] : memref<1x1x256xf32, #tpu.memory_space<vmem>>, vector<1x1x256xf32>
    %5 = vector.shape_cast %4 : vector<1x1x256xf32> to vector<1x256xf32>
    %c0_6 = arith.constant 0 : index
    %c17 = arith.constant 17 : index
    %6 = vector.load %arg12[%c0_6, %c17] : memref<9x290xf32, #tpu.memory_space<vmem>>, vector<1x256xf32>
    tpu.vector_store %arg12[%c0_6, %c17], %5 {strides = array<i32>} : memref<9x290xf32, #tpu.memory_space<vmem>>, vector<1x256xf32>,
    %cst_7 = arith.constant 0.000000e+00 : f32
    %7 = vector.broadcast %cst_7 : f32 to vector<1x256xf32>
    %c0_8 = arith.constant 0 : index
    %c0_9 = arith.constant 0 : index
    %8 = vector.load %arg2[%c0_8, %c0_9] : memref<9x256xf32, #tpu.memory_space<vmem>>, vector<1x256xf32>
    %c0_10 = arith.constant 0 : index
    %c0_11 = arith.constant 0 : index
    %9 = vector.load %arg12[%c0_10, %c0_11] : memref<9x290xf32, #tpu.memory_space<vmem>>, vector<1x256xf32>
    %10 = arith.mulf %8, %9 : vector<1x256xf32>
    %11 = arith.addf %7, %10 : vector<1x256xf32>
    %c1 = arith.constant 1 : index
    %c0_12 = arith.constant 0 : index
    %12 = vector.load %arg2[%c1, %c0_12] : memref<9x256xf32, #tpu.memory_space<vmem>>, vector<1x256xf32>
    %c0_13 = arith.constant 0 : index
    %c1_14 = arith.constant 1 : index
    %13 = vector.load %arg12[%c0_13, %c1_14] : memref<9x290xf32, #tpu.memory_space<vmem>>, vector<1x256xf32>
    %14 = arith.mulf %12, %13 : vector<1x256xf32>
    %15 = arith.addf %11, %14 : vector<1x256xf32>
    %c2 = arith.constant 2 : index
    %c0_15 = arith.constant 0 : index
    %16 = vector.load %arg2[%c2, %c0_15] : memref<9x256xf32, #tpu.memory_space<vmem>>, vector<1x256xf32>
    %c0_16 = arith.constant 0 : index
    %c2_17 = arith.constant 2 : index
    %17 = vector.load %arg12[%c0_16, %c2_17] : memref<9x290xf32, #tpu.memory_space<vmem>>, vector<1x256xf32>
    %18 = arith.mulf %16, %17 : vector<1x256xf32>
    %19 = arith.addf %15, %18 : vector<1x256xf32>
    %c3 = arith.constant 3 : index
    %c0_18 = arith.constant 0 : index
    %20 = vector.load %arg2[%c3, %c0_18] : memref<9x256xf32, #tpu.memory_space<vmem>>, vector<1x256xf32>
    %c0_19 = arith.constant 0 : index
    %c16 = arith.constant 16 : index
    %21 = vector.load %arg12[%c0_19, %c16] : memref<9x290xf32, #tpu.memory_space<vmem>>, vector<1x256xf32>
    %22 = arith.mulf %20, %21 : vector<1x256xf32>
    %23 = arith.addf %19, %22 : vector<1x256xf32>
    %c4 = arith.constant 4 : index
    %c0_20 = arith.constant 0 : index
    %24 = vector.load %arg2[%c4, %c0_20] : memref<9x256xf32, #tpu.memory_space<vmem>>, vector<1x256xf32>
    %c0_21 = arith.constant 0 : index
    %c17_22 = arith.constant 17 : index
    %25 = vector.load %arg12[%c0_21, %c17_22] : memref<9x290xf32, #tpu.memory_space<vmem>>, vector<1x256xf32>
    %26 = arith.mulf %24, %25 : vector<1x256xf32>
    %27 = arith.addf %23, %26 : vector<1x256xf32>
    %c5 = arith.constant 5 : index
    %c0_23 = arith.constant 0 : index
    %28 = vector.load %arg2[%c5, %c0_23] : memref<9x256xf32, #tpu.memory_space<vmem>>, vector<1x256xf32>
    %c0_24 = arith.constant 0 : index
    %c18 = arith.constant 18 : index
    %29 = vector.load %arg12[%c0_24, %c18] : memref<9x290xf32, #tpu.memory_space<vmem>>, vector<1x256xf32>
    %30 = arith.mulf %28, %29 : vector<1x256xf32>
    %31 = arith.addf %27, %30 : vector<1x256xf32>
    %c6 = arith.constant 6 : index
    %c0_25 = arith.constant 0 : index
    %32 = vector.load %arg2[%c6, %c0_25] : memref<9x256xf32, #tpu.memory_space<vmem>>, vector<1x256xf32>
    %c0_26 = arith.constant 0 : index
    %c32 = arith.constant 32 : index
    %33 = vector.load %arg12[%c0_26, %c32] : memref<9x290xf32, #tpu.memory_space<vmem>>, vector<1x256xf32>
    %34 = arith.mulf %32, %33 : vector<1x256xf32>
    %35 = arith.addf %31, %34 : vector<1x256xf32>
    %c7 = arith.constant 7 : index
    %c0_27 = arith.constant 0 : index
    %36 = vector.load %arg2[%c7, %c0_27] : memref<9x256xf32, #tpu.memory_space<vmem>>, vector<1x256xf32>
    %c0_28 = arith.constant 0 : index
    %c33 = arith.constant 33 : index
    %37 = vector.load %arg12[%c0_28, %c33] : memref<9x290xf32, #tpu.memory_space<vmem>>, vector<1x256xf32>
    %38 = arith.mulf %36, %37 : vector<1x256xf32>
    %39 = arith.addf %35, %38 : vector<1x256xf32>
    %c8 = arith.constant 8 : index
    %c0_29 = arith.constant 0 : index
    %40 = vector.load %arg2[%c8, %c0_29] : memref<9x256xf32, #tpu.memory_space<vmem>>, vector<1x256xf32>
    %c0_30 = arith.constant 0 : index
    %c34 = arith.constant 34 : index
    %41 = vector.load %arg12[%c0_30, %c34] : memref<9x290xf32, #tpu.memory_space<vmem>>, vector<1x256xf32>
    %42 = arith.mulf %40, %41 : vector<1x256xf32>
    %43 = arith.addf %39, %42 : vector<1x256xf32>
    %c0_31 = arith.constant 0 : index
    %44 = memref.load %arg9[%c0_31] : memref<1xf32, #tpu.memory_space<smem>>
    %45 = vector.broadcast %44 : f32 to vector<1x256xf32>
    %46 = arith.addf %43, %45 : vector<1x256xf32>
    %47 = arith.subf %5, %46 : vector<1x256xf32>
    %c0_32 = arith.constant 0 : index
    %c17_33 = arith.constant 17 : index
    %48 = vector.load %arg12[%c0_32, %c17_33] : memref<9x290xf32, #tpu.memory_space<vmem>>, vector<1x256xf32>
    tpu.vector_store %arg12[%c0_32, %c17_33], %47 {strides = array<i32>} : memref<9x290xf32, #tpu.memory_space<vmem>>, vector<1x256xf32>,
    %c0_34 = arith.constant 0 : index
    %c0_35 = arith.constant 0 : index
    %49 = vector.load %arg3[%c0_34, %c0_35] : memref<9x256xf32, #tpu.memory_space<vmem>>, vector<1x256xf32>
    %c0_36 = arith.constant 0 : index
    %c0_37 = arith.constant 0 : index
    %50 = vector.load %arg12[%c0_36, %c0_37] : memref<9x290xf32, #tpu.memory_space<vmem>>, vector<1x256xf32>
    %51 = arith.mulf %49, %50 : vector<1x256xf32>
    %c0_38 = arith.constant 0 : index
    %c0_39 = arith.constant 0 : index
    %52 = vector.load %arg13[%c0_38, %c0_39] : memref<9x256xf32, #tpu.memory_space<vmem>>, vector<1x256xf32>
    tpu.vector_store %arg13[%c0_38, %c0_39], %51 {strides = array<i32>} : memref<9x256xf32, #tpu.memory_space<vmem>>, vector<1x256xf32>,
    %c1_40 = arith.constant 1 : index
    %c0_41 = arith.constant 0 : index
    %53 = vector.load %arg3[%c1_40, %c0_41] : memref<9x256xf32, #tpu.memory_space<vmem>>, vector<1x256xf32>
    %c0_42 = arith.constant 0 : index
    %c1_43 = arith.constant 1 : index
    %54 = vector.load %arg12[%c0_42, %c1_43] : memref<9x290xf32, #tpu.memory_space<vmem>>, vector<1x256xf32>
    %55 = arith.mulf %53, %54 : vector<1x256xf32>
    %c1_44 = arith.constant 1 : index
    %c0_45 = arith.constant 0 : index
    %56 = vector.load %arg13[%c1_44, %c0_45] : memref<9x256xf32, #tpu.memory_space<vmem>>, vector<1x256xf32>
    tpu.vector_store %arg13[%c1_44, %c0_45], %55 {strides = array<i32>} : memref<9x256xf32, #tpu.memory_space<vmem>>, vector<1x256xf32>,
    %c2_46 = arith.constant 2 : index
    %c0_47 = arith.constant 0 : index
    %57 = vector.load %arg3[%c2_46, %c0_47] : memref<9x256xf32, #tpu.memory_space<vmem>>, vector<1x256xf32>
    %c0_48 = arith.constant 0 : index
    %c2_49 = arith.constant 2 : index
    %58 = vector.load %arg12[%c0_48, %c2_49] : memref<9x290xf32, #tpu.memory_space<vmem>>, vector<1x256xf32>
    %59 = arith.mulf %57, %58 : vector<1x256xf32>
    %c2_50 = arith.constant 2 : index
    %c0_51 = arith.constant 0 : index
    %60 = vector.load %arg13[%c2_50, %c0_51] : memref<9x256xf32, #tpu.memory_space<vmem>>, vector<1x256xf32>
    tpu.vector_store %arg13[%c2_50, %c0_51], %59 {strides = array<i32>} : memref<9x256xf32, #tpu.memory_space<vmem>>, vector<1x256xf32>,
    %c3_52 = arith.constant 3 : index
    %c0_53 = arith.constant 0 : index
    %61 = vector.load %arg3[%c3_52, %c0_53] : memref<9x256xf32, #tpu.memory_space<vmem>>, vector<1x256xf32>
    %c0_54 = arith.constant 0 : index
    %c16_55 = arith.constant 16 : index
    %62 = vector.load %arg12[%c0_54, %c16_55] : memref<9x290xf32, #tpu.memory_space<vmem>>, vector<1x256xf32>
    %63 = arith.mulf %61, %62 : vector<1x256xf32>
    %c3_56 = arith.constant 3 : index
    %c0_57 = arith.constant 0 : index
    %64 = vector.load %arg13[%c3_56, %c0_57] : memref<9x256xf32, #tpu.memory_space<vmem>>, vector<1x256xf32>
    tpu.vector_store %arg13[%c3_56, %c0_57], %63 {strides = array<i32>} : memref<9x256xf32, #tpu.memory_space<vmem>>, vector<1x256xf32>,
    %c4_58 = arith.constant 4 : index
    %c0_59 = arith.constant 0 : index
    %65 = vector.load %arg3[%c4_58, %c0_59] : memref<9x256xf32, #tpu.memory_space<vmem>>, vector<1x256xf32>
    %c0_60 = arith.constant 0 : index
    %c17_61 = arith.constant 17 : index
    %66 = vector.load %arg12[%c0_60, %c17_61] : memref<9x290xf32, #tpu.memory_space<vmem>>, vector<1x256xf32>
    %67 = arith.mulf %65, %66 : vector<1x256xf32>
    %c4_62 = arith.constant 4 : index
    %c0_63 = arith.constant 0 : index
    %68 = vector.load %arg13[%c4_62, %c0_63] : memref<9x256xf32, #tpu.memory_space<vmem>>, vector<1x256xf32>
    tpu.vector_store %arg13[%c4_62, %c0_63], %67 {strides = array<i32>} : memref<9x256xf32, #tpu.memory_space<vmem>>, vector<1x256xf32>,
    %c5_64 = arith.constant 5 : index
    %c0_65 = arith.constant 0 : index
    %69 = vector.load %arg3[%c5_64, %c0_65] : memref<9x256xf32, #tpu.memory_space<vmem>>, vector<1x256xf32>
    %c0_66 = arith.constant 0 : index
    %c18_67 = arith.constant 18 : index
    %70 = vector.load %arg12[%c0_66, %c18_67] : memref<9x290xf32, #tpu.memory_space<vmem>>, vector<1x256xf32>
    %71 = arith.mulf %69, %70 : vector<1x256xf32>
    %c5_68 = arith.constant 5 : index
    %c0_69 = arith.constant 0 : index
    %72 = vector.load %arg13[%c5_68, %c0_69] : memref<9x256xf32, #tpu.memory_space<vmem>>, vector<1x256xf32>
    tpu.vector_store %arg13[%c5_68, %c0_69], %71 {strides = array<i32>} : memref<9x256xf32, #tpu.memory_space<vmem>>, vector<1x256xf32>,
    %c6_70 = arith.constant 6 : index
    %c0_71 = arith.constant 0 : index
    %73 = vector.load %arg3[%c6_70, %c0_71] : memref<9x256xf32, #tpu.memory_space<vmem>>, vector<1x256xf32>
    %c0_72 = arith.constant 0 : index
    %c32_73 = arith.constant 32 : index
    %74 = vector.load %arg12[%c0_72, %c32_73] : memref<9x290xf32, #tpu.memory_space<vmem>>, vector<1x256xf32>
    %75 = arith.mulf %73, %74 : vector<1x256xf32>
    %c6_74 = arith.constant 6 : index
    %c0_75 = arith.constant 0 : index
    %76 = vector.load %arg13[%c6_74, %c0_75] : memref<9x256xf32, #tpu.memory_space<vmem>>, vector<1x256xf32>
    tpu.vector_store %arg13[%c6_74, %c0_75], %75 {strides = array<i32>} : memref<9x256xf32, #tpu.memory_space<vmem>>, vector<1x256xf32>,
    %c7_76 = arith.constant 7 : index
    %c0_77 = arith.constant 0 : index
    %77 = vector.load %arg3[%c7_76, %c0_77] : memref<9x256xf32, #tpu.memory_space<vmem>>, vector<1x256xf32>
    %c0_78 = arith.constant 0 : index
    %c33_79 = arith.constant 33 : index
    %78 = vector.load %arg12[%c0_78, %c33_79] : memref<9x290xf32, #tpu.memory_space<vmem>>, vector<1x256xf32>
    %79 = arith.mulf %77, %78 : vector<1x256xf32>
    %c7_80 = arith.constant 7 : index
    %c0_81 = arith.constant 0 : index
    %80 = vector.load %arg13[%c7_80, %c0_81] : memref<9x256xf32, #tpu.memory_space<vmem>>, vector<1x256xf32>
    tpu.vector_store %arg13[%c7_80, %c0_81], %79 {strides = array<i32>} : memref<9x256xf32, #tpu.memory_space<vmem>>, vector<1x256xf32>,
    %c8_82 = arith.constant 8 : index
    %c0_83 = arith.constant 0 : index
    %81 = vector.load %arg3[%c8_82, %c0_83] : memref<9x256xf32, #tpu.memory_space<vmem>>, vector<1x256xf32>
    %c0_84 = arith.constant 0 : index
    %c34_85 = arith.constant 34 : index
    %82 = vector.load %arg12[%c0_84, %c34_85] : memref<9x290xf32, #tpu.memory_space<vmem>>, vector<1x256xf32>
    %83 = arith.mulf %81, %82 : vector<1x256xf32>
    %c8_86 = arith.constant 8 : index
    %c0_87 = arith.constant 0 : index
    %84 = vector.load %arg13[%c8_86, %c0_87] : memref<9x256xf32, #tpu.memory_space<vmem>>, vector<1x256xf32>
    tpu.vector_store %arg13[%c8_86, %c0_87], %83 {strides = array<i32>} : memref<9x256xf32, #tpu.memory_space<vmem>>, vector<1x256xf32>,
    %c0_88 = arith.constant 0 : index
    %c0_89 = arith.constant 0 : index
    %85 = vector.load %arg5[%c0_88, %c0_89] : memref<32x9xf32, #tpu.memory_space<vmem>>, vector<32x9xf32>
    %c0_90 = arith.constant 0 : index
    %c0_91 = arith.constant 0 : index
    %86 = vector.load %arg13[%c0_90, %c0_91] : memref<9x256xf32, #tpu.memory_space<vmem>>, vector<9x256xf32>
    %cst_92 = arith.constant dense<0.000000e+00> : vector<32x256xf32>
    %87 = tpu.matmul %85, %86, %cst_92 {dimension_numbers = #tpu.dot_dimension_numbers<[1], [0], [0], [1], [0, 0, 1, 1], [], []>} : vector<32x9xf32>, vector<9x256xf32>, vector<32x256xf32> -> vector<32x256xf32>
    %c0_93 = arith.constant 0 : index
    %c0_94 = arith.constant 0 : index
    %88 = vector.load %arg6[%c0_93, %c0_94] : memref<32x1xf32, #tpu.memory_space<vmem>>, vector<32x1xf32>
    %89 = vector.broadcast %88 : vector<32x1xf32> to vector<32x256xf32>
    %90 = arith.addf %87, %89 : vector<32x256xf32>
    %c0_95 = arith.constant 0 : index
    %c0_96 = arith.constant 0 : index
    %91 = vector.load %arg7[%c0_95, %c0_96] : memref<32x32xf32, #tpu.memory_space<vmem>>, vector<32x32xf32>
    %cst_97 = arith.constant -1.000000e+00 : f32
    %cst_98 = arith.constant 1.000000e+00 : f32
    %92 = vector.broadcast %cst_97 : f32 to vector<32x256xf32>
    %93 = arith.maximumf %92, %90 : vector<32x256xf32>
    %94 = vector.broadcast %cst_98 : f32 to vector<32x256xf32>
    %95 = arith.minimumf %94, %93 : vector<32x256xf32>
    %96 = arith.subf %90, %95 : vector<32x256xf32>
    %cst_99 = arith.constant dense<0.000000e+00> : vector<32x256xf32>
    %97 = tpu.matmul %91, %96, %cst_99 {dimension_numbers = #tpu.dot_dimension_numbers<[1], [0], [0], [1], [0, 0, 1, 1], [], []>} : vector<32x32xf32>, vector<32x256xf32>, vector<32x256xf32> -> vector<32x256xf32>
    %98 = arith.addf %97, %90 : vector<32x256xf32>
    %cst_100 = arith.constant -1.000000e+00 : f32
    %cst_101 = arith.constant 1.000000e+00 : f32
    %99 = vector.broadcast %cst_100 : f32 to vector<32x256xf32>
    %100 = arith.maximumf %99, %98 : vector<32x256xf32>
    %101 = vector.broadcast %cst_101 : f32 to vector<32x256xf32>
    %102 = arith.minimumf %101, %100 : vector<32x256xf32>
    %103 = arith.subf %98, %102 : vector<32x256xf32>
    %cst_102 = arith.constant dense<0.000000e+00> : vector<32x256xf32>
    %104 = tpu.matmul %91, %103, %cst_102 {dimension_numbers = #tpu.dot_dimension_numbers<[1], [0], [0], [1], [0, 0, 1, 1], [], []>} : vector<32x32xf32>, vector<32x256xf32>, vector<32x256xf32> -> vector<32x256xf32>
    %105 = arith.addf %104, %90 : vector<32x256xf32>
    %cst_103 = arith.constant -1.000000e+00 : f32
    %cst_104 = arith.constant 1.000000e+00 : f32
    %106 = vector.broadcast %cst_103 : f32 to vector<32x256xf32>
    %107 = arith.maximumf %106, %105 : vector<32x256xf32>
    %108 = vector.broadcast %cst_104 : f32 to vector<32x256xf32>
    %109 = arith.minimumf %108, %107 : vector<32x256xf32>
    %110 = arith.subf %105, %109 : vector<32x256xf32>
    %cst_105 = arith.constant dense<0.000000e+00> : vector<32x256xf32>
    %111 = tpu.matmul %91, %110, %cst_105 {dimension_numbers = #tpu.dot_dimension_numbers<[1], [0], [0], [1], [0, 0, 1, 1], [], []>} : vector<32x32xf32>, vector<32x256xf32>, vector<32x256xf32> -> vector<32x256xf32>
    %112 = arith.addf %111, %90 : vector<32x256xf32>
    %cst_106 = arith.constant -1.000000e+00 : f32
    %cst_107 = arith.constant 1.000000e+00 : f32
    %113 = vector.broadcast %cst_106 : f32 to vector<32x256xf32>
    %114 = arith.maximumf %113, %112 : vector<32x256xf32>
    %115 = vector.broadcast %cst_107 : f32 to vector<32x256xf32>
    %116 = arith.minimumf %115, %114 : vector<32x256xf32>
    %117 = arith.subf %112, %116 : vector<32x256xf32>
    %cst_108 = arith.constant dense<0.000000e+00> : vector<32x256xf32>
    %118 = tpu.matmul %91, %117, %cst_108 {dimension_numbers = #tpu.dot_dimension_numbers<[1], [0], [0], [1], [0, 0, 1, 1], [], []>} : vector<32x32xf32>, vector<32x256xf32>, vector<32x256xf32> -> vector<32x256xf32>
    %119 = arith.addf %118, %90 : vector<32x256xf32>
    %cst_109 = arith.constant -1.000000e+00 : f32
    %cst_110 = arith.constant 1.000000e+00 : f32
    %120 = vector.broadcast %cst_109 : f32 to vector<32x256xf32>
    %121 = arith.maximumf %120, %119 : vector<32x256xf32>
    %122 = vector.broadcast %cst_110 : f32 to vector<32x256xf32>
    %123 = arith.minimumf %122, %121 : vector<32x256xf32>
    %124 = arith.subf %119, %123 : vector<32x256xf32>
    %c0_111 = arith.constant 0 : index
    %c0_112 = arith.constant 0 : index
    %125 = vector.load %arg8[%c0_111, %c0_112] : memref<9x32xf32, #tpu.memory_space<vmem>>, vector<9x32xf32>
    %cst_113 = arith.constant dense<0.000000e+00> : vector<9x256xf32>
    %126 = tpu.matmul %125, %124, %cst_113 {dimension_numbers = #tpu.dot_dimension_numbers<[1], [0], [0], [1], [0, 0, 1, 1], [], []>} : vector<9x32xf32>, vector<32x256xf32>, vector<9x256xf32> -> vector<9x256xf32>
    %c0_114 = arith.constant 0 : index
    %c17_115 = arith.constant 17 : index
    %127 = vector.load %arg12[%c0_114, %c17_115] : memref<9x290xf32, #tpu.memory_space<vmem>>, vector<9x256xf32>
    tpu.vector_store %arg12[%c0_114, %c17_115], %126 {strides = array<i32>} : memref<9x290xf32, #tpu.memory_space<vmem>>, vector<9x256xf32>,
    %c0_116 = arith.constant 0 : index
    %128 = memref.load %arg10[%c0_116] : memref<1xf32, #tpu.memory_space<smem>>
    %129 = vector.broadcast %128 : f32 to vector<1x256xf32>
    %130 = arith.addf %46, %129 : vector<1x256xf32>
    %c0_117 = arith.constant 0 : index
    %c0_118 = arith.constant 0 : index
    %131 = vector.load %arg4[%c0_117, %c0_118] : memref<9x256xf32, #tpu.memory_space<vmem>>, vector<1x256xf32>
    %c0_119 = arith.constant 0 : index
    %c0_120 = arith.constant 0 : index
    %132 = vector.load %arg12[%c0_119, %c0_120] : memref<9x290xf32, #tpu.memory_space<vmem>>, vector<1x256xf32>
    %133 = arith.mulf %131, %132 : vector<1x256xf32>
    %134 = arith.addf %130, %133 : vector<1x256xf32>
    %c1_121 = arith.constant 1 : index
    %c0_122 = arith.constant 0 : index
    %135 = vector.load %arg4[%c1_121, %c0_122] : memref<9x256xf32, #tpu.memory_space<vmem>>, vector<1x256xf32>
    %c1_123 = arith.constant 1 : index
    %c1_124 = arith.constant 1 : index
    %136 = vector.load %arg12[%c1_123, %c1_124] : memref<9x290xf32, #tpu.memory_space<vmem>>, vector<1x256xf32>
    %137 = arith.mulf %135, %136 : vector<1x256xf32>
    %138 = arith.addf %134, %137 : vector<1x256xf32>
    %c2_125 = arith.constant 2 : index
    %c0_126 = arith.constant 0 : index
    %139 = vector.load %arg4[%c2_125, %c0_126] : memref<9x256xf32, #tpu.memory_space<vmem>>, vector<1x256xf32>
    %c2_127 = arith.constant 2 : index
    %c2_128 = arith.constant 2 : index
    %140 = vector.load %arg12[%c2_127, %c2_128] : memref<9x290xf32, #tpu.memory_space<vmem>>, vector<1x256xf32>
    %141 = arith.mulf %139, %140 : vector<1x256xf32>
    %142 = arith.addf %138, %141 : vector<1x256xf32>
    %c3_129 = arith.constant 3 : index
    %c0_130 = arith.constant 0 : index
    %143 = vector.load %arg4[%c3_129, %c0_130] : memref<9x256xf32, #tpu.memory_space<vmem>>, vector<1x256xf32>
    %c3_131 = arith.constant 3 : index
    %c16_132 = arith.constant 16 : index
    %144 = vector.load %arg12[%c3_131, %c16_132] : memref<9x290xf32, #tpu.memory_space<vmem>>, vector<1x256xf32>
    %145 = arith.mulf %143, %144 : vector<1x256xf32>
    %146 = arith.addf %142, %145 : vector<1x256xf32>
    %c4_133 = arith.constant 4 : index
    %c0_134 = arith.constant 0 : index
    %147 = vector.load %arg4[%c4_133, %c0_134] : memref<9x256xf32, #tpu.memory_space<vmem>>, vector<1x256xf32>
    %c4_135 = arith.constant 4 : index
    %c17_136 = arith.constant 17 : index
    %148 = vector.load %arg12[%c4_135, %c17_136] : memref<9x290xf32, #tpu.memory_space<vmem>>, vector<1x256xf32>
    %149 = arith.mulf %147, %148 : vector<1x256xf32>
    %150 = arith.addf %146, %149 : vector<1x256xf32>
    %c5_137 = arith.constant 5 : index
    %c0_138 = arith.constant 0 : index
    %151 = vector.load %arg4[%c5_137, %c0_138] : memref<9x256xf32, #tpu.memory_space<vmem>>, vector<1x256xf32>
    %c5_139 = arith.constant 5 : index
    %c18_140 = arith.constant 18 : index
    %152 = vector.load %arg12[%c5_139, %c18_140] : memref<9x290xf32, #tpu.memory_space<vmem>>, vector<1x256xf32>
    %153 = arith.mulf %151, %152 : vector<1x256xf32>
    %154 = arith.addf %150, %153 : vector<1x256xf32>
    %c6_141 = arith.constant 6 : index
    %c0_142 = arith.constant 0 : index
    %155 = vector.load %arg4[%c6_141, %c0_142] : memref<9x256xf32, #tpu.memory_space<vmem>>, vector<1x256xf32>
    %c6_143 = arith.constant 6 : index
    %c32_144 = arith.constant 32 : index
    %156 = vector.load %arg12[%c6_143, %c32_144] : memref<9x290xf32, #tpu.memory_space<vmem>>, vector<1x256xf32>
    %157 = arith.mulf %155, %156 : vector<1x256xf32>
    %158 = arith.addf %154, %157 : vector<1x256xf32>
    %c7_145 = arith.constant 7 : index
    %c0_146 = arith.constant 0 : index
    %159 = vector.load %arg4[%c7_145, %c0_146] : memref<9x256xf32, #tpu.memory_space<vmem>>, vector<1x256xf32>
    %c7_147 = arith.constant 7 : index
    %c33_148 = arith.constant 33 : index
    %160 = vector.load %arg12[%c7_147, %c33_148] : memref<9x290xf32, #tpu.memory_space<vmem>>, vector<1x256xf32>
    %161 = arith.mulf %159, %160 : vector<1x256xf32>
    %162 = arith.addf %158, %161 : vector<1x256xf32>
    %c8_149 = arith.constant 8 : index
    %c0_150 = arith.constant 0 : index
    %163 = vector.load %arg4[%c8_149, %c0_150] : memref<9x256xf32, #tpu.memory_space<vmem>>, vector<1x256xf32>
    %c8_151 = arith.constant 8 : index
    %c34_152 = arith.constant 34 : index
    %164 = vector.load %arg12[%c8_151, %c34_152] : memref<9x290xf32, #tpu.memory_space<vmem>>, vector<1x256xf32>
    %165 = arith.mulf %163, %164 : vector<1x256xf32>
    %166 = arith.addf %162, %165 : vector<1x256xf32>
    %c0_153 = arith.constant 0 : index
    %c0_154 = arith.constant 0 : index
    %c0_155 = arith.constant 0 : index
    %167 = vector.load %arg11[%c0_153, %c0_154, %c0_155] : memref<1x1x256xf32, #tpu.memory_space<vmem>>, vector<1x1x256xf32>
    %168 = vector.shape_cast %167 : vector<1x1x256xf32> to vector<1x256xf32>
    %169 = vector.shape_cast %166 : vector<1x256xf32> to vector<1x1x256xf32>
    tpu.vector_store %arg11[%c0_153, %c0_154, %c0_155], %169 {strides = array<i32>} : memref<1x1x256xf32, #tpu.memory_space<vmem>>, vector<1x1x256xf32>,
    return
  }
  func.func @transform_0(%arg0: i32) -> (i32, i32, i32) {
    %c0_i32 = arith.constant 0 : i32
    %c0_i32_0 = arith.constant 0 : i32
    %c0_i32_1 = arith.constant 0 : i32
    return %arg0, %c0_i32, %c0_i32_0 : i32, i32, i32
  }
  func.func @transform_1(%arg0: i32) -> (i32, i32) {
    %c0_i32 = arith.constant 0 : i32
    %c0_i32_0 = arith.constant 0 : i32
    %c0_i32_1 = arith.constant 0 : i32
    return %c0_i32, %c0_i32_0 : i32, i32
  }
  func.func @transform_2(%arg0: i32) -> (i32, i32) {
    %c0_i32 = arith.constant 0 : i32
    %c0_i32_0 = arith.constant 0 : i32
    %c0_i32_1 = arith.constant 0 : i32
    return %c0_i32, %c0_i32_0 : i32, i32
  }
  func.func @transform_3(%arg0: i32) -> (i32, i32) {
    %c0_i32 = arith.constant 0 : i32
    %c0_i32_0 = arith.constant 0 : i32
    %c0_i32_1 = arith.constant 0 : i32
    return %c0_i32, %c0_i32_0 : i32, i32
  }
  func.func @transform_4(%arg0: i32) -> (i32, i32) {
    %c0_i32 = arith.constant 0 : i32
    %c0_i32_0 = arith.constant 0 : i32
    %c0_i32_1 = arith.constant 0 : i32
    return %c0_i32, %c0_i32_0 : i32, i32
  }
  func.func @transform_5(%arg0: i32) -> (i32, i32) {
    %c0_i32 = arith.constant 0 : i32
    %c0_i32_0 = arith.constant 0 : i32
    %c0_i32_1 = arith.constant 0 : i32
    return %c0_i32, %c0_i32_0 : i32, i32
  }
  func.func @transform_6(%arg0: i32) -> (i32, i32) {
    %c0_i32 = arith.constant 0 : i32
    %c0_i32_0 = arith.constant 0 : i32
    %c0_i32_1 = arith.constant 0 : i32
    return %c0_i32, %c0_i32_0 : i32, i32
  }
  func.func @transform_7(%arg0: i32) -> (i32, i32) {
    %c0_i32 = arith.constant 0 : i32
    %c0_i32_0 = arith.constant 0 : i32
    %c0_i32_1 = arith.constant 0 : i32
    return %c0_i32, %c0_i32_0 : i32, i32
  }
  func.func @transform_8(%arg0: i32) -> i32 {
    %c0_i32 = arith.constant 0 : i32
    %c0_i32_0 = arith.constant 0 : i32
    return %c0_i32 : i32
  }
  func.func @transform_9(%arg0: i32) -> i32 {
    %c0_i32 = arith.constant 0 : i32
    %c0_i32_0 = arith.constant 0 : i32
    return %c0_i32 : i32
  }
  func.func @transform_10(%arg0: i32) -> (i32, i32, i32) {
    %c0_i32 = arith.constant 0 : i32
    %c0_i32_0 = arith.constant 0 : i32
    %c0_i32_1 = arith.constant 0 : i32
    return %arg0, %c0_i32, %c0_i32_0 : i32, i32, i32
  }
}

</mosaic_0001>

<llo_original>
// kernel: tpu_custom_call.1
$region0: #{tpu_custom_call.1}
  #allocation0 [shape = 'u32[]', space=smem, size = 0x4, offset = 0x4, fixed_abs, tag = 'smem constant byte address 0x4 - core index']
  #allocation1 [shape = 'u32[144,128]{1,0:T(1,128)}', space=vmem, size = 0x12000, scoped, tag = 'internal scratch']
  #allocation2 [shape = 'f32[9,290]{1,0:T(8,128)}', space=vmem, size = 0x6000, scoped, tag = 'scratch operand']
  #allocation3 [shape = 'f32[9,256]{1,0:T(8,128)}', space=vmem, size = 0x4000, scoped, tag = 'scratch operand']
  #allocation4 [shape = 'f32[1]{0:T(128)S(6)}', space=smem, size = 0x200, scoped, tag = 'scoped memory for tpu_custom_call.1']
  #allocation5 [shape = 'f32[1]{0:T(128)S(6)}', space=smem, size = 0x200, scoped, tag = 'scoped memory for tpu_custom_call.1']
  %s0 = inlined_call_operand.vmem [shape: f32[2,1,256], index: 0, kind: input, shape index: {}]
  %s1 = inlined_call_operand.vmem [shape: f32[9,256], index: 1, kind: input, shape index: {}]
  %s2 = inlined_call_operand.vmem [shape: f32[9,256], index: 2, kind: input, shape index: {}]
  %s3 = inlined_call_operand.hbm [shape: f32[9,256], index: 3, kind: input, shape index: {}]
  %s4 = inlined_call_operand.vmem [shape: f32[32,9], index: 4, kind: input, shape index: {}]
  %s5 = inlined_call_operand.vmem [shape: f32[32,1], index: 5, kind: input, shape index: {}]
  %s6 = inlined_call_operand.hbm [shape: f32[32,32], index: 6, kind: input, shape index: {}]
  %s7 = inlined_call_operand.vmem [shape: f32[9,32], index: 7, kind: input, shape index: {}]
  %s8 = inlined_call_operand.<no memory space> [shape: f32[1], index: 8, kind: input, shape index: {}]
  %s9 = inlined_call_operand.<no memory space> [shape: f32[1], index: 9, kind: input, shape index: {}]
  %s10 = inlined_call_operand.hbm [shape: f32[2,1,256], index: 10, kind: output, shape index: {}]
  %s11 = sld [smem:[#allocation0]]
  $region81: #{tpu_custom_call.1} parent=0
    _
  %s13 = ssub.s32 1, %s11
  %s14 = scalar_select 0, %s13, %s11
  %15 = sst [smem:[#allocation4]] %s8
  %16 = sst [smem:[#allocation5]] %s9
  $region1: #{tpu_custom_call.1} parent=0
    #allocation6 [shape = 'u8[16384]{0}', space=vmem, size = 0x4000, scoped, tag = 'input window, operand 3, single buffered']
    #allocation7 [shape = 's32[2]{0}', space=sflag, size = 0x8, scoped, tag = 'scoped memory for tpu_custom_call.1']
    #allocation8 [shape = 's32[2]{0}', space=sflag, size = 0x8, scoped, tag = 'scoped memory for tpu_custom_call.1']
    #allocation9 [shape = 'u8[16384]{0}', space=vmem, size = 0x4000, scoped, tag = 'input window, operand 6, single buffered']
    #allocation10 [shape = 's32[1]{0}', space=sflag, size = 0x4, scoped, tag = 'scoped memory for tpu_custom_call.1']
    #allocation11 [shape = 'u8[2048]{0}', space=vmem, size = 0x800, scoped, tag = 'output window, operand 0']
    %17 = vsyncpa [#allocation7], 0
    %18 = vsyncpa [#allocation10], 0
    %19 = vsyncpa [#allocation8], 0
    %s20 = scalar_lea.sflag [#allocation8], 1
    %21 = vsyncpa %s20, 0
    loop: start=0, step=1, limit=4
    $region2: #{tpu_custom_call.1} parent=1 // loop_pre_header
      _
    $region3: #{tpu_custom_call.1} parent=1 // loop_header
      %s23 = sphi 0, %s27
      %p24 = scmp.ge.s32.totalorder %s23, 4
      %s33 = sphi 0, %s35
      %s36 = sphi 0, %s33
      %s37 = sphi 0, %s36
      %s53 = sphi 0, %s37
      %s57 = sphi 0, %s57
      %s59 = sphi 0, %s57
      %s60 = sphi 0, %s59
      %s74 = sphi 0, %s60
      %s78 = sphi 0, %s78
      %s80 = sphi 0, %s78
      %s81 = sphi 0, %s80
      %s95 = sphi 0, %s81
      %s99 = sphi 0, %s99
      %s101 = sphi 0, %s99
      %s102 = sphi 0, %s101
      %s116 = sphi 0, %s102
      %s120 = sphi 0, %s120
      %s122 = sphi 0, %s120
      %s123 = sphi 0, %s122
      %s137 = sphi 0, %s123
      %s141 = sphi 0, %s141
      %s143 = sphi 0, %s141
      %s144 = sphi 0, %s143
      %s158 = sphi 0, %s144
      %s162 = sphi 0, %s162
      %s164 = sphi 0, %s162
      %s165 = sphi 0, %s164
      %s179 = sphi 0, %s165
      %s183 = sphi 0, %s183
      %s185 = sphi 0, %s183
      %s186 = sphi 0, %s185
      %s200 = sphi 0, %s186
      %s204 = sphi 0, %s204
      %s206 = sphi 0, %s204
      %s207 = sphi 0, %s206
      %s221 = sphi 0, %s207
      %s225 = sphi 0, %s225
      %s227 = sphi 0, %s225
      %s228 = sphi 0, %s227
      %s242 = sphi 0, %s228
      %s248 = sphi 0, %s250
      %s251 = sphi 0, %s248
      %s252 = sphi 0, %s251
      %s268 = sphi 0, %s252
    $region4: #{tpu_custom_call.1} parent=1 // loop_header_branch
      %26 = sbr.rel (%p24) target = $region8
    $region5: #{tpu_custom_call.1} parent=1 // loop_body
      %s28 = ssub.s32 %s23, 1
      %s29 = ssub.s32 %s23, 2
      %s30 = sadd.s32 %s23, 1
      %s31 = ssub.s32 %s23, %s30
      %p32 = scmp.eq.s32.totalorder %s31, 0
      %s34 = sadd.s32 %s33, 1
      %s35 = scalar_select %p32, %s33, %s34
      %p38 = pneg %p32
      %p39 = scmp.eq.s32.totalorder %s23, 1
      %p40 = por %p38, %p39
      %p41 = scmp.ne.s32.totalorder %s33, %s36
      %p42 = scmp.eq.s32.totalorder %s23, 0
      %p43 = por %p41, %p42
      %p44 = scmp.ne.s32.totalorder %s33, %s36
      %p45 = scmp.eq.s32.totalorder %s28, 1
      %p46 = por %p44, %p45
      %p47 = scmp.ne.s32.totalorder %s36, %s37
      %p48 = scmp.eq.s32.totalorder %s28, 0
      %p49 = por %p47, %p48
      %p50 = scmp.ne.s32.totalorder %s36, %s37
      %p51 = scmp.eq.s32.totalorder %s29, 1
      %p52 = por %p50, %p51
      %p54 = scmp.ne.s32.totalorder %s37, %s53
      %p55 = scmp.eq.s32.totalorder %s29, 0
      %p56 = por %p54, %p55
      %s58 = sadd.s32 %s57, 1
      %p61 = scmp.eq.s32.totalorder %s23, 1
      %p62 = scmp.ne.s32.totalorder %s57, %s59
      %p63 = scmp.eq.s32.totalorder %s23, 0
      %p64 = por %p62, %p63
      %p65 = scmp.ne.s32.totalorder %s57, %s59
      %p66 = scmp.eq.s32.totalorder %s28, 1
      %p67 = por %p65, %p66
      %p68 = scmp.ne.s32.totalorder %s59, %s60
      %p69 = scmp.eq.s32.totalorder %s28, 0
      %p70 = por %p68, %p69
      %p71 = scmp.ne.s32.totalorder %s59, %s60
      %p72 = scmp.eq.s32.totalorder %s29, 1
      %p73 = por %p71, %p72
      %p75 = scmp.ne.s32.totalorder %s60, %s74
      %p76 = scmp.eq.s32.totalorder %s29, 0
      %p77 = por %p75, %p76
      %s79 = sadd.s32 %s78, 1
      %p82 = scmp.eq.s32.totalorder %s23, 1
      %p83 = scmp.ne.s32.totalorder %s78, %s80
      %p84 = scmp.eq.s32.totalorder %s23, 0
      %p85 = por %p83, %p84
      %p86 = scmp.ne.s32.totalorder %s78, %s80
      %p87 = scmp.eq.s32.totalorder %s28, 1
      %p88 = por %p86, %p87
      %p89 = scmp.ne.s32.totalorder %s80, %s81
      %p90 = scmp.eq.s32.totalorder %s28, 0
      %p91 = por %p89, %p90
      %p92 = scmp.ne.s32.totalorder %s80, %s81
      %p93 = scmp.eq.s32.totalorder %s29, 1
      %p94 = por %p92, %p93
      %p96 = scmp.ne.s32.totalorder %s81, %s95
      %p97 = scmp.eq.s32.totalorder %s29, 0
      %p98 = por %p96, %p97
      %s100 = sadd.s32 %s99, 1
      %p103 = scmp.eq.s32.totalorder %s23, 1
      %p104 = scmp.ne.s32.totalorder %s99, %s101
      %p105 = scmp.eq.s32.totalorder %s23, 0
      %p106 = por %p104, %p105
      %p107 = scmp.ne.s32.totalorder %s99, %s101
      %p108 = scmp.eq.s32.totalorder %s28, 1
      %p109 = por %p107, %p108
      %p110 = scmp.ne.s32.totalorder %s101, %s102
      %p111 = scmp.eq.s32.totalorder %s28, 0
      %p112 = por %p110, %p111
      %p113 = scmp.ne.s32.totalorder %s101, %s102
      %p114 = scmp.eq.s32.totalorder %s29, 1
      %p115 = por %p113, %p114
      %p117 = scmp.ne.s32.totalorder %s102, %s116
      %p118 = scmp.eq.s32.totalorder %s29, 0
      %p119 = por %p117, %p118
      %s121 = sadd.s32 %s120, 1
      %p124 = scmp.eq.s32.totalorder %s23, 1
      %p125 = scmp.ne.s32.totalorder %s120, %s122
      %p126 = scmp.eq.s32.totalorder %s23, 0
      %p127 = por %p125, %p126
      %p128 = scmp.ne.s32.totalorder %s120, %s122
      %p129 = scmp.eq.s32.totalorder %s28, 1
      %p130 = por %p128, %p129
      %p131 = scmp.ne.s32.totalorder %s122, %s123
      %p132 = scmp.eq.s32.totalorder %s28, 0
      %p133 = por %p131, %p132
      %p134 = scmp.ne.s32.totalorder %s122, %s123
      %p135 = scmp.eq.s32.totalorder %s29, 1
      %p136 = por %p134, %p135
      %p138 = scmp.ne.s32.totalorder %s123, %s137
      %p139 = scmp.eq.s32.totalorder %s29, 0
      %p140 = por %p138, %p139
      %s142 = sadd.s32 %s141, 1
      %p145 = scmp.eq.s32.totalorder %s23, 1
      %p146 = scmp.ne.s32.totalorder %s141, %s143
      %p147 = scmp.eq.s32.totalorder %s23, 0
      %p148 = por %p146, %p147
      %p149 = scmp.ne.s32.totalorder %s141, %s143
      %p150 = scmp.eq.s32.totalorder %s28, 1
      %p151 = por %p149, %p150
      %p152 = scmp.ne.s32.totalorder %s143, %s144
      %p153 = scmp.eq.s32.totalorder %s28, 0
      %p154 = por %p152, %p153
      %p155 = scmp.ne.s32.totalorder %s143, %s144
      %p156 = scmp.eq.s32.totalorder %s29, 1
      %p157 = por %p155, %p156
      %p159 = scmp.ne.s32.totalorder %s144, %s158
      %p160 = scmp.eq.s32.totalorder %s29, 0
      %p161 = por %p159, %p160
      %s163 = sadd.s32 %s162, 1
      %p166 = scmp.eq.s32.totalorder %s23, 1
      %p167 = scmp.ne.s32.totalorder %s162, %s164
      %p168 = scmp.eq.s32.totalorder %s23, 0
      %p169 = por %p167, %p168
      %p170 = scmp.ne.s32.totalorder %s162, %s164
      %p171 = scmp.eq.s32.totalorder %s28, 1
      %p172 = por %p170, %p171
      %p173 = scmp.ne.s32.totalorder %s164, %s165
      %p174 = scmp.eq.s32.totalorder %s28, 0
      %p175 = por %p173, %p174
      %p176 = scmp.ne.s32.totalorder %s164, %s165
      %p177 = scmp.eq.s32.totalorder %s29, 1
      %p178 = por %p176, %p177
      %p180 = scmp.ne.s32.totalorder %s165, %s179
      %p181 = scmp.eq.s32.totalorder %s29, 0
      %p182 = por %p180, %p181
      %s184 = sadd.s32 %s183, 1
      %p187 = scmp.eq.s32.totalorder %s23, 1
      %p188 = scmp.ne.s32.totalorder %s183, %s185
      %p189 = scmp.eq.s32.totalorder %s23, 0
      %p190 = por %p188, %p189
      %p191 = scmp.ne.s32.totalorder %s183, %s185
      %p192 = scmp.eq.s32.totalorder %s28, 1
      %p193 = por %p191, %p192
      %p194 = scmp.ne.s32.totalorder %s185, %s186
      %p195 = scmp.eq.s32.totalorder %s28, 0
      %p196 = por %p194, %p195
      %p197 = scmp.ne.s32.totalorder %s185, %s186
      %p198 = scmp.eq.s32.totalorder %s29, 1
      %p199 = por %p197, %p198
      %p201 = scmp.ne.s32.totalorder %s186, %s200
      %p202 = scmp.eq.s32.totalorder %s29, 0
      %p203 = por %p201, %p202
      %s205 = sadd.s32 %s204, 1
      %p208 = scmp.eq.s32.totalorder %s23, 1
      %p209 = scmp.ne.s32.totalorder %s204, %s206
      %p210 = scmp.eq.s32.totalorder %s23, 0
      %p211 = por %p209, %p210
      %p212 = scmp.ne.s32.totalorder %s204, %s206
      %p213 = scmp.eq.s32.totalorder %s28, 1
      %p214 = por %p212, %p213
      %p215 = scmp.ne.s32.totalorder %s206, %s207
      %p216 = scmp.eq.s32.totalorder %s28, 0
      %p217 = por %p215, %p216
      %p218 = scmp.ne.s32.totalorder %s206, %s207
      %p219 = scmp.eq.s32.totalorder %s29, 1
      %p220 = por %p218, %p219
      %p222 = scmp.ne.s32.totalorder %s207, %s221
      %p223 = scmp.eq.s32.totalorder %s29, 0
      %p224 = por %p222, %p223
      %s226 = sadd.s32 %s225, 1
      %p229 = scmp.eq.s32.totalorder %s23, 1
      %p230 = scmp.ne.s32.totalorder %s225, %s227
      %p231 = scmp.eq.s32.totalorder %s23, 0
      %p232 = por %p230, %p231
      %p233 = scmp.ne.s32.totalorder %s225, %s227
      %p234 = scmp.eq.s32.totalorder %s28, 1
      %p235 = por %p233, %p234
      %p236 = scmp.ne.s32.totalorder %s227, %s228
      %p237 = scmp.eq.s32.totalorder %s28, 0
      %p238 = por %p236, %p237
      %p239 = scmp.ne.s32.totalorder %s227, %s228
      %p240 = scmp.eq.s32.totalorder %s29, 1
      %p241 = por %p239, %p240
      %p243 = scmp.ne.s32.totalorder %s228, %s242
      %p244 = scmp.eq.s32.totalorder %s29, 0
      %p245 = por %p243, %p244
      %s246 = ssub.s32 %s23, %s30
      %p247 = scmp.eq.s32.totalorder %s246, 0
      %s249 = sadd.s32 %s248, 1
      %s250 = scalar_select %p247, %s248, %s249
      %p253 = pneg %p247
      %p254 = scmp.eq.s32.totalorder %s23, 1
      %p255 = por %p253, %p254
      %p256 = scmp.ne.s32.totalorder %s248, %s251
      %p257 = scmp.eq.s32.totalorder %s23, 0
      %p258 = por %p256, %p257
      %p259 = scmp.ne.s32.totalorder %s248, %s251
      %p260 = scmp.eq.s32.totalorder %s28, 1
      %p261 = por %p259, %p260
      %p262 = scmp.ne.s32.totalorder %s251, %s252
      %p263 = scmp.eq.s32.totalorder %s28, 0
      %p264 = por %p262, %p263
      %p265 = scmp.ne.s32.totalorder %s251, %s252
      %p266 = scmp.eq.s32.totalorder %s29, 1
      %p267 = por %p265, %p266
      %p269 = scmp.ne.s32.totalorder %s252, %s268
      %p270 = scmp.eq.s32.totalorder %s29, 0
      %p271 = por %p269, %p270
      %p272 = scmp.le.s32.totalorder 1, %s23
      %p273 = scmp.lt.s32.totalorder %s23, 3
      %p274 = pnand %p272, %p273
      %p275 = pneg %p274
      // Predicated region
      $region9: #{tpu_custom_call.1} parent=5 // pred_check
        _
      $region10: #{tpu_custom_call.1} parent=5 // pred_check_branch
        %277 = sbr.rel (%p274) target = $region12
      $region11: #{tpu_custom_call.1} parent=5 // pred_region
        %s278 = ssub.s32 %s23, 1
        // Predicated region
        $region13: #{tpu_custom_call.1} parent=11 // pred_check
          %p279 = pneg %p70
        $region14: #{tpu_custom_call.1} parent=11 // pred_check_branch
          %281 = sbr.rel (%p279) target = $region16
        $region15: #{tpu_custom_call.1} parent=11 // pred_region
          _
        $region16: #{tpu_custom_call.1} parent=11 // pred_fallthru
          _
        // Predicated region
        $region17: #{tpu_custom_call.1} parent=11 // pred_check
          %p282 = pneg %p91
        $region18: #{tpu_custom_call.1} parent=11 // pred_check_branch
          %284 = sbr.rel (%p282) target = $region20
        $region19: #{tpu_custom_call.1} parent=11 // pred_region
          _
        $region20: #{tpu_custom_call.1} parent=11 // pred_fallthru
          _
        // Predicated region
        $region21: #{tpu_custom_call.1} parent=11 // pred_check
          %p285 = pneg %p112
        $region22: #{tpu_custom_call.1} parent=11 // pred_check_branch
          %287 = sbr.rel (%p285) target = $region24
        $region23: #{tpu_custom_call.1} parent=11 // pred_region
          %s289 = ssub.s32 512, 512
          %290 = vsyncadd [#allocation7], %s289
          %s291 = sshll.u32 [#allocation6], 4
          %s292 = int_to_ptr.vmem [resolvable:$true] %s291
          %297 = dma.hbm_to_vmem [thread:$0]  %s3, 512, %s292, [#allocation7], 256, 256, 16
        $region24: #{tpu_custom_call.1} parent=11 // pred_fallthru
          _
        // Predicated region
        $region25: #{tpu_custom_call.1} parent=11 // pred_check
          %p298 = pneg %p133
        $region26: #{tpu_custom_call.1} parent=11 // pred_check_branch
          %300 = sbr.rel (%p298) target = $region28
        $region27: #{tpu_custom_call.1} parent=11 // pred_region
          _
        $region28: #{tpu_custom_call.1} parent=11 // pred_fallthru
          _
        // Predicated region
        $region29: #{tpu_custom_call.1} parent=11 // pred_check
          %p301 = pneg %p154
        $region30: #{tpu_custom_call.1} parent=11 // pred_check_branch
          %303 = sbr.rel (%p301) target = $region32
        $region31: #{tpu_custom_call.1} parent=11 // pred_region
          _
        $region32: #{tpu_custom_call.1} parent=11 // pred_fallthru
          _
        // Predicated region
        $region33: #{tpu_custom_call.1} parent=11 // pred_check
          %p304 = pneg %p175
        $region34: #{tpu_custom_call.1} parent=11 // pred_check_branch
          %306 = sbr.rel (%p304) target = $region36
        $region35: #{tpu_custom_call.1} parent=11 // pred_region
          %s308 = ssub.s32 512, 512
          %309 = vsyncadd [#allocation10], %s308
          %s310 = sshll.u32 [#allocation9], 4
          %s311 = int_to_ptr.vmem [resolvable:$true] %s310
          %316 = dma.hbm_to_vmem [thread:$0]  %s6, 512, %s311, [#allocation10], 128, 128, 8
        $region36: #{tpu_custom_call.1} parent=11 // pred_fallthru
          _
        // Predicated region
        $region37: #{tpu_custom_call.1} parent=11 // pred_check
          %p317 = pneg %p196
        $region38: #{tpu_custom_call.1} parent=11 // pred_check_branch
          %319 = sbr.rel (%p317) target = $region40
        $region39: #{tpu_custom_call.1} parent=11 // pred_region
          _
        $region40: #{tpu_custom_call.1} parent=11 // pred_fallthru
          _
        // Predicated region
        $region41: #{tpu_custom_call.1} parent=11 // pred_check
          %p320 = pneg %p217
        $region42: #{tpu_custom_call.1} parent=11 // pred_check_branch
          %322 = sbr.rel (%p320) target = $region44
        $region43: #{tpu_custom_call.1} parent=11 // pred_region
          _
        $region44: #{tpu_custom_call.1} parent=11 // pred_fallthru
          _
        // Predicated region
        $region45: #{tpu_custom_call.1} parent=11 // pred_check
          %p323 = pneg %p238
        $region46: #{tpu_custom_call.1} parent=11 // pred_check_branch
          %325 = sbr.rel (%p323) target = $region48
        $region47: #{tpu_custom_call.1} parent=11 // pred_region
          _
        $region48: #{tpu_custom_call.1} parent=11 // pred_fallthru
          _
      $region12: #{tpu_custom_call.1} parent=5 // pred_fallthru
        _
      %p326 = scmp.lt.s32.totalorder %s23, 2
      // Predicated region
      $region49: #{tpu_custom_call.1} parent=5 // pred_check
        %p327 = pneg %p326
      $region50: #{tpu_custom_call.1} parent=5 // pred_check_branch
        %329 = sbr.rel (%p327) target = $region52
      $region51: #{tpu_custom_call.1} parent=5 // pred_region
        // Predicated region
        $region53: #{tpu_custom_call.1} parent=51 // pred_check
          %p330 = pneg %p43
        $region54: #{tpu_custom_call.1} parent=51 // pred_check_branch
          %332 = sbr.rel (%p330) target = $region56
        $region55: #{tpu_custom_call.1} parent=51 // pred_region
          %p333 = scmp.lt.s32.totalorder %s23, 1
          %s334 = scalar_select %p333, %s23, 1
          %s335 = smul.addr %s334, 2
          %s336 = scalar_lea.vmem %s0, %s335
        $region56: #{tpu_custom_call.1} parent=51 // pred_fallthru
          _
      $region52: #{tpu_custom_call.1} parent=5 // pred_fallthru
        _
      %p337 = scmp.le.s32.totalorder 1, %s23
      %p338 = scmp.lt.s32.totalorder %s23, 3
      %p339 = pnand %p337, %p338
      %p340 = pneg %p339
      // Predicated region
      $region57: #{tpu_custom_call.1} parent=5 // pred_check
        _
      $region58: #{tpu_custom_call.1} parent=5 // pred_check_branch
        %342 = sbr.rel (%p339) target = $region60
      $region59: #{tpu_custom_call.1} parent=5 // pred_region
        %s343 = ssub.s32 %s23, 1
        // Predicated region
        $region61: #{tpu_custom_call.1} parent=59 // pred_check
          %p344 = pneg %p112
        $region62: #{tpu_custom_call.1} parent=59 // pred_check_branch
          %346 = sbr.rel (%p344) target = $region64
        $region63: #{tpu_custom_call.1} parent=59 // pred_region
          %347 = dma.done [#allocation7], 512
        $region64: #{tpu_custom_call.1} parent=59 // pred_fallthru
          _
        // Predicated region
        $region65: #{tpu_custom_call.1} parent=59 // pred_check
          %p348 = pneg %p175
        $region66: #{tpu_custom_call.1} parent=59 // pred_check_branch
          %350 = sbr.rel (%p348) target = $region68
        $region67: #{tpu_custom_call.1} parent=59 // pred_region
          %351 = dma.done [#allocation10], 512
        $region68: #{tpu_custom_call.1} parent=59 // pred_fallthru
          _
        %p352 = scmp.lt.s32.totalorder %s28, 1
        %s353 = scalar_select %p352, %s28, 1
        %s354 = smul.addr %s353, 2
        %s355 = scalar_lea.vmem %s0, %s354
        %p356 = pneg %p49
        %p357 = pneg %p46
        %p358 = pneg %p70
        %p359 = pneg %p67
        %p360 = pneg %p91
        %p361 = pneg %p88
        %p362 = pneg %p112
        %p363 = pneg %p109
        %p364 = pneg %p133
        %p365 = pneg %p130
        %p366 = pneg %p154
        %p367 = pneg %p151
        %p368 = pneg %p175
        %p369 = pneg %p172
        %p370 = pneg %p196
        %p371 = pneg %p193
        %p372 = pneg %p217
        %p373 = pneg %p214
        %p374 = pneg %p238
        %p375 = pneg %p235
        %p376 = pneg %p264
        %p377 = pneg %p261
        %s378 = sand.u32 %s251, 1
        %s379 = scalar_lea.sflag [#allocation8], %s378
        %s380 = sand.u32 %s251, 1
        %s381 = smul.addr %s380, 2
        %s382 = scalar_lea.vmem [#allocation11], %s381
        %p383 = scmp.lt.s32.totalorder %s28, 1
        %s384 = scalar_select %p383, %s28, 1
        %s385 = smul.addr %s384, 2
        %s386 = scalar_lea.vmem %s0, %s385
        %vm387 = vcmask 138240
        %388 = vst.msk [vmem:[#allocation2] sm:$0xff] %vm387, 0.0
        %vm389 = vcmask 131072
        %390 = vst.msk [vmem:[#allocation2 + $0x18] sm:$0x1] %vm389, 0.0
        %vm391 = vcmask 277640
        %392 = vst.msk [vmem:[#allocation2 + $0x10] sm:$0xff] %vm391, 0.0
        %vm393 = vcmask 270472
        %394 = vst.msk [vmem:[#allocation2 + $0x28] sm:$0x1] %vm393, 0.0
        %v395 = vld [vmem:[%s386] sm:$0x3]
        %397 = vrot.lane.b32.xlu0 %v395, 17
        %v398 = vpop.permute.xlu0 %397
        %v399 = vrot.slane %v398, 7
        %v400 = vsel %vm387, %v399, %v398
        %v402 = vlaneseq
        %vm403 = vcmp.ge.s32.totalorder %v402, 17
        %vm404 = vcmp.lt.s32.totalorder %v402, 273
        %vm405 = vmand %vm403, %vm404
        %406 = vst.msk [vmem:[#allocation2] ss:$8 sm:$0x7] %vm405, %v400
        %407 = vst.msk [vmem:[#allocation2] ss:$8 sm:$0x0] %vm405, %v400
        %v408 = vld [vmem:[%s1] ss:$8 sm:$0x3]
        %v409 = vld [vmem:[#allocation2] ss:$8 sm:$0x3]
        %v410 = vmul.f32 %v408, %v409
        %v411 = vadd.f32 %v410, 0.0
        %s412 = scalar_lea.vmem %s1, 1
        %v413 = vld [vmem:[%s412] ss:$8 sm:$0x3]
        %v414 = vld [vmem:[#allocation2] ss:$8 sm:$0x7]
        %416 = vrot.lane.b32.xlu0 %v414, 127
        %v417 = vpop.permute.xlu0 %416
        %v418 = vrot.slane %v417, 1
        %vm419 = vcmask 1039360
        %v420 = vsel %vm419, %v417, %v418
        %v422 = vmul.f32 %v413, %v420
        %v423 = vadd.f32 %v411, %v422
        %s424 = scalar_lea.vmem %s1, 2
        %v425 = vld [vmem:[%s424] ss:$8 sm:$0x3]
        %426 = vrot.lane.b32.xlu0 %v414, 126
        %v427 = vpop.permute.xlu0 %426
        %v428 = vrot.slane %v427, 1
        %vm429 = vcmask 1031168
        %v430 = vsel %vm429, %v427, %v428
        %v432 = vmul.f32 %v425, %v430
        %v433 = vadd.f32 %v423, %v432
        %s434 = scalar_lea.vmem %s1, 3
        %v435 = vld [vmem:[%s434] ss:$8 sm:$0x3]
        %436 = vrot.lane.b32.xlu0 %v414, 112
        %v437 = vpop.permute.xlu0 %436
        %v438 = vrot.slane %v437, 1
        %vm439 = vcmask 916480
        %v440 = vsel %vm439, %v437, %v438
        %v442 = vmul.f32 %v435, %v440
        %v443 = vadd.f32 %v433, %v442
        %s444 = scalar_lea.vmem %s1, 4
        %v445 = vld [vmem:[%s444] ss:$8 sm:$0x3]
        %446 = vrot.lane.b32.xlu0 %v414, 111
        %v447 = vpop.permute.xlu0 %446
        %v448 = vrot.slane %v447, 1
        %vm449 = vcmask 908288
        %v450 = vsel %vm449, %v447, %v448
        %v452 = vmul.f32 %v445, %v450
        %v453 = vadd.f32 %v443, %v452
        %s454 = scalar_lea.vmem %s1, 5
        %v455 = vld [vmem:[%s454] ss:$8 sm:$0x3]
        %456 = vrot.lane.b32.xlu0 %v414, 110
        %v457 = vpop.permute.xlu0 %456
        %v458 = vrot.slane %v457, 1
        %vm459 = vcmask 900096
        %v460 = vsel %vm459, %v457, %v458
        %v462 = vmul.f32 %v455, %v460
        %v463 = vadd.f32 %v453, %v462
        %s464 = scalar_lea.vmem %s1, 6
        %v465 = vld [vmem:[%s464] ss:$8 sm:$0x3]
        %466 = vrot.lane.b32.xlu0 %v414, 96
        %v467 = vpop.permute.xlu0 %466
        %v468 = vrot.slane %v467, 1
        %vm469 = vcmask 785408
        %v470 = vsel %vm469, %v467, %v468
        %v472 = vmul.f32 %v465, %v470
        %v473 = vadd.f32 %v463, %v472
        %s474 = scalar_lea.vmem %s1, 7
        %v475 = vld [vmem:[%s474] ss:$8 sm:$0x3]
        %476 = vrot.lane.b32.xlu0 %v414, 95
        %v477 = vpop.permute.xlu0 %476
        %v478 = vrot.slane %v477, 1
        %vm479 = vcmask 777216
        %v480 = vsel %vm479, %v477, %v478
        %v482 = vmul.f32 %v475, %v480
        %v483 = vadd.f32 %v473, %v482
        %s484 = scalar_lea.vmem %s1, 16
        %v485 = vld [vmem:[%s484] ss:$8 sm:$0x3]
        %486 = vrot.lane.b32.xlu0 %v414, 94
        %v487 = vpop.permute.xlu0 %486
        %v488 = vrot.slane %v487, 1
        %vm489 = vcmask 769024
        %v490 = vsel %vm489, %v487, %v488
        %v492 = vmul.f32 %v485, %v490
        %v493 = vadd.f32 %v483, %v492
        %s494 = sld [smem:[#allocation4]]
        %v495 = vstv %s494
        %v496 = vadd.f32 %v493, %v495
        %v497 = vsub.f32 %v395, %v496
        %499 = vrot.lane.b32.xlu0 %v497, 17
        %v500 = vpop.permute.xlu0 %499
        %v501 = vrot.slane %v500, 7
        %v502 = vsel %vm387, %v501, %v500
        %504 = vst.msk [vmem:[#allocation2] ss:$8 sm:$0x7] %vm405, %v502
        %505 = vst.msk [vmem:[#allocation2] ss:$8 sm:$0x0] %vm405, %v502
        %v506 = vld [vmem:[%s2] ss:$8 sm:$0x3]
        %v507 = vld [vmem:[#allocation2] ss:$8 sm:$0x3]
        %v508 = vmul.f32 %v506, %v507
        %vm509 = vcmp.ge.s32.totalorder %v402, 0
        %vm510 = vcmp.lt.s32.totalorder %v402, 256
        %vm511 = vmand %vm509, %vm510
        %512 = vst.msk [vmem:[#allocation3] ss:$8 sm:$0x3] %vm511, %v508
        %513 = vst.msk [vmem:[#allocation3] ss:$8 sm:$0x0] %vm511, %v508
        %s514 = scalar_lea.vmem %s2, 1
        %v515 = vld [vmem:[%s514] ss:$8 sm:$0x3]
        %v516 = vld [vmem:[#allocation2] ss:$8 sm:$0x7]
        %518 = vrot.lane.b32.xlu0 %v516, 127
        %v519 = vpop.permute.xlu0 %518
        %v520 = vrot.slane %v519, 1
        %v521 = vsel %vm419, %v519, %v520
        %v523 = vmul.f32 %v515, %v521
        %s524 = scalar_lea.vmem [#allocation3], 1
        %525 = vst.msk [vmem:[%s524] ss:$8 sm:$0x3] %vm511, %v523
        %526 = vst.msk [vmem:[%s524] ss:$8 sm:$0x0] %vm511, %v523
        %s527 = scalar_lea.vmem %s2, 2
        %v528 = vld [vmem:[%s527] ss:$8 sm:$0x3]
        %v529 = vld [vmem:[#allocation2] ss:$8 sm:$0x7]
        %531 = vrot.lane.b32.xlu0 %v529, 126
        %v532 = vpop.permute.xlu0 %531
        %v533 = vrot.slane %v532, 1
        %v534 = vsel %vm429, %v532, %v533
        %v536 = vmul.f32 %v528, %v534
        %s537 = scalar_lea.vmem [#allocation3], 2
        %538 = vst.msk [vmem:[%s537] ss:$8 sm:$0x3] %vm511, %v536
        %539 = vst.msk [vmem:[%s537] ss:$8 sm:$0x0] %vm511, %v536
        %s540 = scalar_lea.vmem %s2, 3
        %v541 = vld [vmem:[%s540] ss:$8 sm:$0x3]
        %v542 = vld [vmem:[#allocation2] ss:$8 sm:$0x7]
        %544 = vrot.lane.b32.xlu0 %v542, 112
        %v545 = vpop.permute.xlu0 %544
        %v546 = vrot.slane %v545, 1
        %v547 = vsel %vm439, %v545, %v546
        %v549 = vmul.f32 %v541, %v547
        %s550 = scalar_lea.vmem [#allocation3], 3
        %551 = vst.msk [vmem:[%s550] ss:$8 sm:$0x3] %vm511, %v549
        %552 = vst.msk [vmem:[%s550] ss:$8 sm:$0x0] %vm511, %v549
        %s553 = scalar_lea.vmem %s2, 4
        %v554 = vld [vmem:[%s553] ss:$8 sm:$0x3]
        %v555 = vld [vmem:[#allocation2] ss:$8 sm:$0x7]
        %557 = vrot.lane.b32.xlu0 %v555, 111
        %v558 = vpop.permute.xlu0 %557
        %v559 = vrot.slane %v558, 1
        %v560 = vsel %vm449, %v558, %v559
        %v562 = vmul.f32 %v554, %v560
        %s563 = scalar_lea.vmem [#allocation3], 4
        %564 = vst.msk [vmem:[%s563] ss:$8 sm:$0x3] %vm511, %v562
        %565 = vst.msk [vmem:[%s563] ss:$8 sm:$0x0] %vm511, %v562
        %s566 = scalar_lea.vmem %s2, 5
        %v567 = vld [vmem:[%s566] ss:$8 sm:$0x3]
        %v568 = vld [vmem:[#allocation2] ss:$8 sm:$0x7]
        %570 = vrot.lane.b32.xlu0 %v568, 110
        %v571 = vpop.permute.xlu0 %570
        %v572 = vrot.slane %v571, 1
        %v573 = vsel %vm459, %v571, %v572
        %v575 = vmul.f32 %v567, %v573
        %s576 = scalar_lea.vmem [#allocation3], 5
        %577 = vst.msk [vmem:[%s576] ss:$8 sm:$0x3] %vm511, %v575
        %578 = vst.msk [vmem:[%s576] ss:$8 sm:$0x0] %vm511, %v575
        %s579 = scalar_lea.vmem %s2, 6
        %v580 = vld [vmem:[%s579] ss:$8 sm:$0x3]
        %v581 = vld [vmem:[#allocation2] ss:$8 sm:$0x7]
        %583 = vrot.lane.b32.xlu0 %v581, 96
        %v584 = vpop.permute.xlu0 %583
        %v585 = vrot.slane %v584, 1
        %v586 = vsel %vm469, %v584, %v585
        %v588 = vmul.f32 %v580, %v586
        %s589 = scalar_lea.vmem [#allocation3], 6
        %590 = vst.msk [vmem:[%s589] ss:$8 sm:$0x3] %vm511, %v588
        %591 = vst.msk [vmem:[%s589] ss:$8 sm:$0x0] %vm511, %v588
        %s592 = scalar_lea.vmem %s2, 7
        %v593 = vld [vmem:[%s592] ss:$8 sm:$0x3]
        %v594 = vld [vmem:[#allocation2] ss:$8 sm:$0x7]
        %596 = vrot.lane.b32.xlu0 %v594, 95
        %v597 = vpop.permute.xlu0 %596
        %v598 = vrot.slane %v597, 1
        %v599 = vsel %vm479, %v597, %v598
        %v601 = vmul.f32 %v593, %v599
        %s602 = scalar_lea.vmem [#allocation3], 7
        %603 = vst.msk [vmem:[%s602] ss:$8 sm:$0x3] %vm511, %v601
        %604 = vst.msk [vmem:[%s602] ss:$8 sm:$0x0] %vm511, %v601
        %s605 = scalar_lea.vmem %s2, 16
        %v606 = vld [vmem:[%s605] ss:$8 sm:$0x3]
        %v607 = vld [vmem:[#allocation2] ss:$8 sm:$0x7]
        %609 = vrot.lane.b32.xlu0 %v607, 94
        %v610 = vpop.permute.xlu0 %609
        %v611 = vrot.slane %v610, 1
        %v612 = vsel %vm489, %v610, %v611
        %v614 = vmul.f32 %v606, %v612
        %s615 = scalar_lea.vmem [#allocation3], 16
        %616 = vst.msk [vmem:[%s615] ss:$8 sm:$0x3] %vm511, %v614
        %617 = vst.msk [vmem:[%s615] ss:$8 sm:$0x0] %vm511, %v614
        %v618 = vld [vmem:[%s4] sm:$0xff]
        %v619 = vld [vmem:[%s4 + $0x8] sm:$0xff]
        %v620 = vld [vmem:[%s4 + $0x10] sm:$0xff]
        %v621 = vld [vmem:[%s4 + $0x18] sm:$0xff]
        %v622 = vld [vmem:[#allocation3] sm:$0xff]
        %v623 = vld [vmem:[#allocation3 + $0x8] sm:$0xff]
        %v624 = vld [vmem:[#allocation3 + $0x10] sm:$0x1]
        %v625 = vld [vmem:[#allocation3 + $0x18] sm:$0x1]
        %v626 = vld [vmem:[%s5] sm:$0xff]
        %v627 = vld [vmem:[%s5 + $0x8] sm:$0xff]
        %v628 = vld [vmem:[%s5 + $0x10] sm:$0xff]
        %v629 = vld [vmem:[%s5 + $0x18] sm:$0xff]
        %631 = vset.pattern.permute.xlu0 0
        %632 = vperm.xlu0 %631, %v626
        %v633 = vpop.permute.xlu0 %632
        %636 = vset.pattern.permute.xlu0 0
        %637 = vperm.xlu0 %636, %v627
        %v638 = vpop.permute.xlu0 %637
        %641 = vset.pattern.permute.xlu0 0
        %642 = vperm.xlu0 %641, %v628
        %v643 = vpop.permute.xlu0 %642
        %646 = vset.pattern.permute.xlu0 0
        %647 = vperm.xlu0 %646, %v629
        %v648 = vpop.permute.xlu0 %647
        %vm650 = vcmask 72704
        %v652 = vsel %vm650, %v618, 0
        %v655 = vsel %vm650, %v619, 0
        %v658 = vsel %vm650, %v620, 0
        %v661 = vsel %vm650, %v621, 0
        %vm663 = vcmask 1040384
        %v665 = vsel %vm663, %v624, 0
        %v668 = vsel %vm663, %v625, 0
        %670 = vmatprep.subr.mxu0 0.0
        %671 = vmatpush1.msra.mxu0 0.0
        %672 = vmatprep.subr.mxu0 0.0
        %673 = vmatpush1.msra.mxu0 0.0
        %674 = vmatprep.subr.mxu0 0.0
        %675 = vmatpush1.msra.mxu0 0.0
        %676 = vmatprep.subr.mxu0 0.0
        %677 = vmatpush1.msra.mxu0 0.0
        %678 = vmatprep.subr.mxu0 0.0
        %679 = vmatpush1.msra.mxu0 0.0
        %680 = vmatprep.subr.mxu0 0.0
        %681 = vmatpush1.msra.mxu0 0.0
        %682 = vmatprep.subr.mxu0 0.0
        %683 = vmatpush1.msra.mxu0 0.0
        %684 = vmatprep.subr.mxu0 0.0
        %685 = vmatpush1.msra.mxu0 0.0
        %686 = vmatprep.subr.mxu0 0.0
        %687 = vmatpush1.msra.mxu0 0.0
        %688 = vmatprep.subr.mxu0 0.0
        %689 = vmatpush1.msra.mxu0 0.0
        %690 = vmatprep.subr.mxu0 0.0
        %691 = vmatpush1.msra.mxu0 0.0
        %692 = vmatprep.subr.mxu0 0.0
        %693 = vmatpush1.msra.mxu0 0.0
        %694 = vmatprep.subr.mxu0 0.0
        %695 = vmatpush1.msra.mxu0 0.0
        %696 = vmatprep.subr.mxu0 0.0
        %697 = vmatpush1.msra.mxu0 0.0
        %698 = vmatprep.subr.mxu0 %v668
        %699 = vmatpush1.msra.mxu0 %v665
        %700 = vmatprep.subr.mxu0 %v623
        %701 = vmatpush1.msra.mxu0 %v622
        %702 = vmatprep.subr.mxu0 0.0
        %703 = vmatpush2.msra.mxu0 0.0
        %704 = vmatprep.subr.mxu0 0.0
        %705 = vmatpush2.msra.mxu0 0.0
        %706 = vmatprep.subr.mxu0 0.0
        %707 = vmatpush2.msra.mxu0 0.0
        %708 = vmatprep.subr.mxu0 0.0
        %709 = vmatpush2.msra.mxu0 0.0
        %710 = vmatprep.subr.mxu0 0.0
        %711 = vmatpush2.msra.mxu0 0.0
        %712 = vmatprep.subr.mxu0 0.0
        %713 = vmatpush2.msra.mxu0 0.0
        %714 = vmatprep.subr.mxu0 0.0
        %715 = vmatpush2.msra.mxu0 0.0
        %716 = vmatprep.subr.mxu0 0.0
        %717 = vmatpush2.msra.mxu0 0.0
        %718 = vmatprep.subr.mxu0 0.0
        %719 = vmatpush2.msra.mxu0 0.0
        %720 = vmatprep.subr.mxu0 0.0
        %721 = vmatpush2.msra.mxu0 0.0
        %722 = vmatprep.subr.mxu0 0.0
        %723 = vmatpush2.msra.mxu0 0.0
        %724 = vmatprep.subr.mxu0 0.0
        %725 = vmatpush2.msra.mxu0 0.0
        %726 = vmatprep.subr.mxu0 0.0
        %727 = vmatpush2.msra.mxu0 0.0
        %728 = vmatprep.subr.mxu0 0.0
        %729 = vmatpush2.msra.mxu0 0.0
        %730 = vmatprep.subr.mxu0 0.0
        %731 = vmatpush2.msra.mxu0 0.0
        %732 = vmatprep.subr.mxu0 0.0
        %733 = vmatpush2.msra.mxu0 0.0
        %734 = vmatprep.mubr.f32.mxu0 0.0
        %735 = vmatmul.mubr.f32.gmra.mxu0 %v652
        %v736 = vpop.f32.mrf.mxu0
        %v737 = vadd.f32 %v633, %v736
        %v738 = vpop.f32.mrf.mxu0
        %v739 = vadd.f32 %v633, %v738
        %740 = vmatprep.mubr.f32.mxu0 0.0
        %741 = vmatmul.mubr.f32.gmra.mxu0 %v655
        %v742 = vpop.f32.mrf.mxu0
        %v743 = vadd.f32 %v638, %v742
        %v744 = vpop.f32.mrf.mxu0
        %v745 = vadd.f32 %v638, %v744
        %746 = vmatprep.mubr.f32.mxu0 0.0
        %747 = vmatmul.mubr.f32.gmra.mxu0 %v658
        %v748 = vpop.f32.mrf.mxu0
        %v749 = vadd.f32 %v643, %v748
        %v750 = vpop.f32.mrf.mxu0
        %v751 = vadd.f32 %v643, %v750
        %752 = vmatprep.mubr.f32.mxu0 0.0
        %753 = vmatmul.mubr.f32.gmra.mxu0 %v661
        %v754 = vpop.f32.mrf.mxu0
        %v755 = vadd.f32 %v648, %v754
        %v756 = vpop.f32.mrf.mxu0
        %v757 = vadd.f32 %v648, %v756
        %758 = vdwg.mxu0
        %v759 = vld [vmem:[#allocation9] sm:$0xff]
        %v760 = vld [vmem:[#allocation9 + $0x8] sm:$0xff]
        %v761 = vld [vmem:[#allocation9 + $0x10] sm:$0xff]
        %v762 = vld [vmem:[#allocation9 + $0x18] sm:$0xff]
        %v763 = vmax.f32 %v737, -1.0
        %v764 = vmax.f32 %v739, -1.0
        %v765 = vmax.f32 %v743, -1.0
        %v766 = vmax.f32 %v745, -1.0
        %v767 = vmax.f32 %v749, -1.0
        %v768 = vmax.f32 %v751, -1.0
        %v769 = vmax.f32 %v755, -1.0
        %v770 = vmax.f32 %v757, -1.0
        %v771 = vmin.f32 %v763, 1.0
        %v772 = vmin.f32 %v764, 1.0
        %v773 = vmin.f32 %v765, 1.0
        %v774 = vmin.f32 %v766, 1.0
        %v775 = vmin.f32 %v767, 1.0
        %v776 = vmin.f32 %v768, 1.0
        %v777 = vmin.f32 %v769, 1.0
        %v778 = vmin.f32 %v770, 1.0
        %v779 = vsub.f32 %v737, %v771
        %v780 = vsub.f32 %v739, %v772
        %v781 = vsub.f32 %v743, %v773
        %v782 = vsub.f32 %v745, %v774
        %v783 = vsub.f32 %v749, %v775
        %v784 = vsub.f32 %v751, %v776
        %v785 = vsub.f32 %v755, %v777
        %v786 = vsub.f32 %v757, %v778
        %vm787 = vcmask 261120
        %v789 = vsel %vm787, %v759, 0
        %v792 = vsel %vm787, %v760, 0
        %v795 = vsel %vm787, %v761, 0
        %v798 = vsel %vm787, %v762, 0
        %800 = vmatprep.subr.mxu0 0.0
        %801 = vmatpush1.msra.mxu0 0.0
        %802 = vmatprep.subr.mxu0 0.0
        %803 = vmatpush1.msra.mxu0 0.0
        %804 = vmatprep.subr.mxu0 0.0
        %805 = vmatpush1.msra.mxu0 0.0
        %806 = vmatprep.subr.mxu0 0.0
        %807 = vmatpush1.msra.mxu0 0.0
        %808 = vmatprep.subr.mxu0 0.0
        %809 = vmatpush1.msra.mxu0 0.0
        %810 = vmatprep.subr.mxu0 0.0
        %811 = vmatpush1.msra.mxu0 0.0
        %812 = vmatprep.subr.mxu0 0.0
        %813 = vmatpush1.msra.mxu0 0.0
        %814 = vmatprep.subr.mxu0 0.0
        %815 = vmatpush1.msra.mxu0 0.0
        %816 = vmatprep.subr.mxu0 0.0
        %817 = vmatpush1.msra.mxu0 0.0
        %818 = vmatprep.subr.mxu0 0.0
        %819 = vmatpush1.msra.mxu0 0.0
        %820 = vmatprep.subr.mxu0 0.0
        %821 = vmatpush1.msra.mxu0 0.0
        %822 = vmatprep.subr.mxu0 0.0
        %823 = vmatpush1.msra.mxu0 0.0
        %824 = vmatprep.subr.mxu0 %v786
        %825 = vmatpush1.msra.mxu0 %v785
        %826 = vmatprep.subr.mxu0 %v784
        %827 = vmatpush1.msra.mxu0 %v783
        %828 = vmatprep.subr.mxu0 %v782
        %829 = vmatpush1.msra.mxu0 %v781
        %830 = vmatprep.subr.mxu0 %v780
        %831 = vmatpush1.msra.mxu0 %v779
        %832 = vmatprep.subr.mxu0 0.0
        %833 = vmatpush2.msra.mxu0 0.0
        %834 = vmatprep.subr.mxu0 0.0
        %835 = vmatpush2.msra.mxu0 0.0
        %836 = vmatprep.subr.mxu0 0.0
        %837 = vmatpush2.msra.mxu0 0.0
        %838 = vmatprep.subr.mxu0 0.0
        %839 = vmatpush2.msra.mxu0 0.0
        %840 = vmatprep.subr.mxu0 0.0
        %841 = vmatpush2.msra.mxu0 0.0
        %842 = vmatprep.subr.mxu0 0.0
        %843 = vmatpush2.msra.mxu0 0.0
        %844 = vmatprep.subr.mxu0 0.0
        %845 = vmatpush2.msra.mxu0 0.0
        %846 = vmatprep.subr.mxu0 0.0
        %847 = vmatpush2.msra.mxu0 0.0
        %848 = vmatprep.subr.mxu0 0.0
        %849 = vmatpush2.msra.mxu0 0.0
        %850 = vmatprep.subr.mxu0 0.0
        %851 = vmatpush2.msra.mxu0 0.0
        %852 = vmatprep.subr.mxu0 0.0
        %853 = vmatpush2.msra.mxu0 0.0
        %854 = vmatprep.subr.mxu0 0.0
        %855 = vmatpush2.msra.mxu0 0.0
        %856 = vmatprep.subr.mxu0 0.0
        %857 = vmatpush2.msra.mxu0 0.0
        %858 = vmatprep.subr.mxu0 0.0
        %859 = vmatpush2.msra.mxu0 0.0
        %860 = vmatprep.subr.mxu0 0.0
        %861 = vmatpush2.msra.mxu0 0.0
        %862 = vmatprep.subr.mxu0 0.0
        %863 = vmatpush2.msra.mxu0 0.0
        %864 = vmatprep.mubr.f32.mxu0 0.0
        %865 = vmatmul.mubr.f32.gmra.mxu0 %v789
        %v866 = vpop.f32.mrf.mxu0
        %v867 = vadd.f32 %v737, %v866
        %v868 = vpop.f32.mrf.mxu0
        %v869 = vadd.f32 %v739, %v868
        %870 = vmatprep.mubr.f32.mxu0 0.0
        %871 = vmatmul.mubr.f32.gmra.mxu0 %v792
        %v872 = vpop.f32.mrf.mxu0
        %v873 = vadd.f32 %v743, %v872
        %v874 = vpop.f32.mrf.mxu0
        %v875 = vadd.f32 %v745, %v874
        %876 = vmatprep.mubr.f32.mxu0 0.0
        %877 = vmatmul.mubr.f32.gmra.mxu0 %v795
        %v878 = vpop.f32.mrf.mxu0
        %v879 = vadd.f32 %v749, %v878
        %v880 = vpop.f32.mrf.mxu0
        %v881 = vadd.f32 %v751, %v880
        %882 = vmatprep.mubr.f32.mxu0 0.0
        %883 = vmatmul.mubr.f32.gmra.mxu0 %v798
        %v884 = vpop.f32.mrf.mxu0
        %v885 = vadd.f32 %v755, %v884
        %v886 = vpop.f32.mrf.mxu0
        %v887 = vadd.f32 %v757, %v886
        %888 = vdwg.mxu0
        %v889 = vmax.f32 %v867, -1.0
        %v890 = vmax.f32 %v869, -1.0
        %v891 = vmax.f32 %v873, -1.0
        %v892 = vmax.f32 %v875, -1.0
        %v893 = vmax.f32 %v879, -1.0
        %v894 = vmax.f32 %v881, -1.0
        %v895 = vmax.f32 %v885, -1.0
        %v896 = vmax.f32 %v887, -1.0
        %v897 = vmin.f32 %v889, 1.0
        %v898 = vmin.f32 %v890, 1.0
        %v899 = vmin.f32 %v891, 1.0
        %v900 = vmin.f32 %v892, 1.0
        %v901 = vmin.f32 %v893, 1.0
        %v902 = vmin.f32 %v894, 1.0
        %v903 = vmin.f32 %v895, 1.0
        %v904 = vmin.f32 %v896, 1.0
        %v905 = vsub.f32 %v867, %v897
        %v906 = vsub.f32 %v869, %v898
        %v907 = vsub.f32 %v873, %v899
        %v908 = vsub.f32 %v875, %v900
        %v909 = vsub.f32 %v879, %v901
        %v910 = vsub.f32 %v881, %v902
        %v911 = vsub.f32 %v885, %v903
        %v912 = vsub.f32 %v887, %v904
        %913 = vmatprep.subr.mxu0 0.0
        %914 = vmatpush1.msra.mxu0 0.0
        %915 = vmatprep.subr.mxu0 0.0
        %916 = vmatpush1.msra.mxu0 0.0
        %917 = vmatprep.subr.mxu0 0.0
        %918 = vmatpush1.msra.mxu0 0.0
        %919 = vmatprep.subr.mxu0 0.0
        %920 = vmatpush1.msra.mxu0 0.0
        %921 = vmatprep.subr.mxu0 0.0
        %922 = vmatpush1.msra.mxu0 0.0
        %923 = vmatprep.subr.mxu0 0.0
        %924 = vmatpush1.msra.mxu0 0.0
        %925 = vmatprep.subr.mxu0 0.0
        %926 = vmatpush1.msra.mxu0 0.0
        %927 = vmatprep.subr.mxu0 0.0
        %928 = vmatpush1.msra.mxu0 0.0
        %929 = vmatprep.subr.mxu0 0.0
        %930 = vmatpush1.msra.mxu0 0.0
        %931 = vmatprep.subr.mxu0 0.0
        %932 = vmatpush1.msra.mxu0 0.0
        %933 = vmatprep.subr.mxu0 0.0
        %934 = vmatpush1.msra.mxu0 0.0
        %935 = vmatprep.subr.mxu0 0.0
        %936 = vmatpush1.msra.mxu0 0.0
        %937 = vmatprep.subr.mxu0 %v912
        %938 = vmatpush1.msra.mxu0 %v911
        %939 = vmatprep.subr.mxu0 %v910
        %940 = vmatpush1.msra.mxu0 %v909
        %941 = vmatprep.subr.mxu0 %v908
        %942 = vmatpush1.msra.mxu0 %v907
        %943 = vmatprep.subr.mxu0 %v906
        %944 = vmatpush1.msra.mxu0 %v905
        %945 = vmatprep.subr.mxu0 0.0
        %946 = vmatpush2.msra.mxu0 0.0
        %947 = vmatprep.subr.mxu0 0.0
        %948 = vmatpush2.msra.mxu0 0.0
        %949 = vmatprep.subr.mxu0 0.0
        %950 = vmatpush2.msra.mxu0 0.0
        %951 = vmatprep.subr.mxu0 0.0
        %952 = vmatpush2.msra.mxu0 0.0
        %953 = vmatprep.subr.mxu0 0.0
        %954 = vmatpush2.msra.mxu0 0.0
        %955 = vmatprep.subr.mxu0 0.0
        %956 = vmatpush2.msra.mxu0 0.0
        %957 = vmatprep.subr.mxu0 0.0
        %958 = vmatpush2.msra.mxu0 0.0
        %959 = vmatprep.subr.mxu0 0.0
        %960 = vmatpush2.msra.mxu0 0.0
        %961 = vmatprep.subr.mxu0 0.0
        %962 = vmatpush2.msra.mxu0 0.0
        %963 = vmatprep.subr.mxu0 0.0
        %964 = vmatpush2.msra.mxu0 0.0
        %965 = vmatprep.subr.mxu0 0.0
        %966 = vmatpush2.msra.mxu0 0.0
        %967 = vmatprep.subr.mxu0 0.0
        %968 = vmatpush2.msra.mxu0 0.0
        %969 = vmatprep.subr.mxu0 0.0
        %970 = vmatpush2.msra.mxu0 0.0
        %971 = vmatprep.subr.mxu0 0.0
        %972 = vmatpush2.msra.mxu0 0.0
        %973 = vmatprep.subr.mxu0 0.0
        %974 = vmatpush2.msra.mxu0 0.0
        %975 = vmatprep.subr.mxu0 0.0
        %976 = vmatpush2.msra.mxu0 0.0
        %977 = vmatprep.mubr.f32.mxu0 0.0
        %978 = vmatmul.mubr.f32.gmra.mxu0 %v789
        %v979 = vpop.f32.mrf.mxu0
        %v980 = vadd.f32 %v737, %v979
        %v981 = vpop.f32.mrf.mxu0
        %v982 = vadd.f32 %v739, %v981
        %983 = vmatprep.mubr.f32.mxu0 0.0
        %984 = vmatmul.mubr.f32.gmra.mxu0 %v792
        %v985 = vpop.f32.mrf.mxu0
        %v986 = vadd.f32 %v743, %v985
        %v987 = vpop.f32.mrf.mxu0
        %v988 = vadd.f32 %v745, %v987
        %989 = vmatprep.mubr.f32.mxu0 0.0
        %990 = vmatmul.mubr.f32.gmra.mxu0 %v795
        %v991 = vpop.f32.mrf.mxu0
        %v992 = vadd.f32 %v749, %v991
        %v993 = vpop.f32.mrf.mxu0
        %v994 = vadd.f32 %v751, %v993
        %995 = vmatprep.mubr.f32.mxu0 0.0
        %996 = vmatmul.mubr.f32.gmra.mxu0 %v798
        %v997 = vpop.f32.mrf.mxu0
        %v998 = vadd.f32 %v755, %v997
        %v999 = vpop.f32.mrf.mxu0
        %v1000 = vadd.f32 %v757, %v999
        %1001 = vdwg.mxu0
        %v1002 = vmax.f32 %v980, -1.0
        %v1003 = vmax.f32 %v982, -1.0
        %v1004 = vmax.f32 %v986, -1.0
        %v1005 = vmax.f32 %v988, -1.0
        %v1006 = vmax.f32 %v992, -1.0
        %v1007 = vmax.f32 %v994, -1.0
        %v1008 = vmax.f32 %v998, -1.0
        %v1009 = vmax.f32 %v1000, -1.0
        %v1010 = vmin.f32 %v1002, 1.0
        %v1011 = vmin.f32 %v1003, 1.0
        %v1012 = vmin.f32 %v1004, 1.0
        %v1013 = vmin.f32 %v1005, 1.0
        %v1014 = vmin.f32 %v1006, 1.0
        %v1015 = vmin.f32 %v1007, 1.0
        %v1016 = vmin.f32 %v1008, 1.0
        %v1017 = vmin.f32 %v1009, 1.0
        %v1018 = vsub.f32 %v980, %v1010
        %v1019 = vsub.f32 %v982, %v1011
        %v1020 = vsub.f32 %v986, %v1012
        %v1021 = vsub.f32 %v988, %v1013
        %v1022 = vsub.f32 %v992, %v1014
        %v1023 = vsub.f32 %v994, %v1015
        %v1024 = vsub.f32 %v998, %v1016
        %v1025 = vsub.f32 %v1000, %v1017
        %1026 = vmatprep.subr.mxu0 0.0
        %1027 = vmatpush1.msra.mxu0 0.0
        %1028 = vmatprep.subr.mxu0 0.0
        %1029 = vmatpush1.msra.mxu0 0.0
        %1030 = vmatprep.subr.mxu0 0.0
        %1031 = vmatpush1.msra.mxu0 0.0
        %1032 = vmatprep.subr.mxu0 0.0
        %1033 = vmatpush1.msra.mxu0 0.0
        %1034 = vmatprep.subr.mxu0 0.0
        %1035 = vmatpush1.msra.mxu0 0.0
        %1036 = vmatprep.subr.mxu0 0.0
        %1037 = vmatpush1.msra.mxu0 0.0
        %1038 = vmatprep.subr.mxu0 0.0
        %1039 = vmatpush1.msra.mxu0 0.0
        %1040 = vmatprep.subr.mxu0 0.0
        %1041 = vmatpush1.msra.mxu0 0.0
        %1042 = vmatprep.subr.mxu0 0.0
        %1043 = vmatpush1.msra.mxu0 0.0
        %1044 = vmatprep.subr.mxu0 0.0
        %1045 = vmatpush1.msra.mxu0 0.0
        %1046 = vmatprep.subr.mxu0 0.0
        %1047 = vmatpush1.msra.mxu0 0.0
        %1048 = vmatprep.subr.mxu0 0.0
        %1049 = vmatpush1.msra.mxu0 0.0
        %1050 = vmatprep.subr.mxu0 %v1025
        %1051 = vmatpush1.msra.mxu0 %v1024
        %1052 = vmatprep.subr.mxu0 %v1023
        %1053 = vmatpush1.msra.mxu0 %v1022
        %1054 = vmatprep.subr.mxu0 %v1021
        %1055 = vmatpush1.msra.mxu0 %v1020
        %1056 = vmatprep.subr.mxu0 %v1019
        %1057 = vmatpush1.msra.mxu0 %v1018
        %1058 = vmatprep.subr.mxu0 0.0
        %1059 = vmatpush2.msra.mxu0 0.0
        %1060 = vmatprep.subr.mxu0 0.0
        %1061 = vmatpush2.msra.mxu0 0.0
        %1062 = vmatprep.subr.mxu0 0.0
        %1063 = vmatpush2.msra.mxu0 0.0
        %1064 = vmatprep.subr.mxu0 0.0
        %1065 = vmatpush2.msra.mxu0 0.0
        %1066 = vmatprep.subr.mxu0 0.0
        %1067 = vmatpush2.msra.mxu0 0.0
        %1068 = vmatprep.subr.mxu0 0.0
        %1069 = vmatpush2.msra.mxu0 0.0
        %1070 = vmatprep.subr.mxu0 0.0
        %1071 = vmatpush2.msra.mxu0 0.0
        %1072 = vmatprep.subr.mxu0 0.0
        %1073 = vmatpush2.msra.mxu0 0.0
        %1074 = vmatprep.subr.mxu0 0.0
        %1075 = vmatpush2.msra.mxu0 0.0
        %1076 = vmatprep.subr.mxu0 0.0
        %1077 = vmatpush2.msra.mxu0 0.0
        %1078 = vmatprep.subr.mxu0 0.0
        %1079 = vmatpush2.msra.mxu0 0.0
        %1080 = vmatprep.subr.mxu0 0.0
        %1081 = vmatpush2.msra.mxu0 0.0
        %1082 = vmatprep.subr.mxu0 0.0
        %1083 = vmatpush2.msra.mxu0 0.0
        %1084 = vmatprep.subr.mxu0 0.0
        %1085 = vmatpush2.msra.mxu0 0.0
        %1086 = vmatprep.subr.mxu0 0.0
        %1087 = vmatpush2.msra.mxu0 0.0
        %1088 = vmatprep.subr.mxu0 0.0
        %1089 = vmatpush2.msra.mxu0 0.0
        %1090 = vmatprep.mubr.f32.mxu0 0.0
        %1091 = vmatmul.mubr.f32.gmra.mxu0 %v789
        %v1092 = vpop.f32.mrf.mxu0
        %v1093 = vadd.f32 %v737, %v1092
        %v1094 = vpop.f32.mrf.mxu0
        %v1095 = vadd.f32 %v739, %v1094
        %1096 = vmatprep.mubr.f32.mxu0 0.0
        %1097 = vmatmul.mubr.f32.gmra.mxu0 %v792
        %v1098 = vpop.f32.mrf.mxu0
        %v1099 = vadd.f32 %v743, %v1098
        %v1100 = vpop.f32.mrf.mxu0
        %v1101 = vadd.f32 %v745, %v1100
        %1102 = vmatprep.mubr.f32.mxu0 0.0
        %1103 = vmatmul.mubr.f32.gmra.mxu0 %v795
        %v1104 = vpop.f32.mrf.mxu0
        %v1105 = vadd.f32 %v749, %v1104
        %v1106 = vpop.f32.mrf.mxu0
        %v1107 = vadd.f32 %v751, %v1106
        %1108 = vmatprep.mubr.f32.mxu0 0.0
        %1109 = vmatmul.mubr.f32.gmra.mxu0 %v798
        %v1110 = vpop.f32.mrf.mxu0
        %v1111 = vadd.f32 %v755, %v1110
        %v1112 = vpop.f32.mrf.mxu0
        %v1113 = vadd.f32 %v757, %v1112
        %1114 = vdwg.mxu0
        %v1115 = vmax.f32 %v1093, -1.0
        %v1116 = vmax.f32 %v1095, -1.0
        %v1117 = vmax.f32 %v1099, -1.0
        %v1118 = vmax.f32 %v1101, -1.0
        %v1119 = vmax.f32 %v1105, -1.0
        %v1120 = vmax.f32 %v1107, -1.0
        %v1121 = vmax.f32 %v1111, -1.0
        %v1122 = vmax.f32 %v1113, -1.0
        %v1123 = vmin.f32 %v1115, 1.0
        %v1124 = vmin.f32 %v1116, 1.0
        %v1125 = vmin.f32 %v1117, 1.0
        %v1126 = vmin.f32 %v1118, 1.0
        %v1127 = vmin.f32 %v1119, 1.0
        %v1128 = vmin.f32 %v1120, 1.0
        %v1129 = vmin.f32 %v1121, 1.0
        %v1130 = vmin.f32 %v1122, 1.0
        %v1131 = vsub.f32 %v1093, %v1123
        %v1132 = vsub.f32 %v1095, %v1124
        %v1133 = vsub.f32 %v1099, %v1125
        %v1134 = vsub.f32 %v1101, %v1126
        %v1135 = vsub.f32 %v1105, %v1127
        %v1136 = vsub.f32 %v1107, %v1128
        %v1137 = vsub.f32 %v1111, %v1129
        %v1138 = vsub.f32 %v1113, %v1130
        %1139 = vmatprep.subr.mxu0 0.0
        %1140 = vmatpush1.msra.mxu0 0.0
        %1141 = vmatprep.subr.mxu0 0.0
        %1142 = vmatpush1.msra.mxu0 0.0
        %1143 = vmatprep.subr.mxu0 0.0
        %1144 = vmatpush1.msra.mxu0 0.0
        %1145 = vmatprep.subr.mxu0 0.0
        %1146 = vmatpush1.msra.mxu0 0.0
        %1147 = vmatprep.subr.mxu0 0.0
        %1148 = vmatpush1.msra.mxu0 0.0
        %1149 = vmatprep.subr.mxu0 0.0
        %1150 = vmatpush1.msra.mxu0 0.0
        %1151 = vmatprep.subr.mxu0 0.0
        %1152 = vmatpush1.msra.mxu0 0.0
        %1153 = vmatprep.subr.mxu0 0.0
        %1154 = vmatpush1.msra.mxu0 0.0
        %1155 = vmatprep.subr.mxu0 0.0
        %1156 = vmatpush1.msra.mxu0 0.0
        %1157 = vmatprep.subr.mxu0 0.0
        %1158 = vmatpush1.msra.mxu0 0.0
        %1159 = vmatprep.subr.mxu0 0.0
        %1160 = vmatpush1.msra.mxu0 0.0
        %1161 = vmatprep.subr.mxu0 0.0
        %1162 = vmatpush1.msra.mxu0 0.0
        %1163 = vmatprep.subr.mxu0 %v1138
        %1164 = vmatpush1.msra.mxu0 %v1137
        %1165 = vmatprep.subr.mxu0 %v1136
        %1166 = vmatpush1.msra.mxu0 %v1135
        %1167 = vmatprep.subr.mxu0 %v1134
        %1168 = vmatpush1.msra.mxu0 %v1133
        %1169 = vmatprep.subr.mxu0 %v1132
        %1170 = vmatpush1.msra.mxu0 %v1131
        %1171 = vmatprep.subr.mxu0 0.0
        %1172 = vmatpush2.msra.mxu0 0.0
        %1173 = vmatprep.subr.mxu0 0.0
        %1174 = vmatpush2.msra.mxu0 0.0
        %1175 = vmatprep.subr.mxu0 0.0
        %1176 = vmatpush2.msra.mxu0 0.0
        %1177 = vmatprep.subr.mxu0 0.0
        %1178 = vmatpush2.msra.mxu0 0.0
        %1179 = vmatprep.subr.mxu0 0.0
        %1180 = vmatpush2.msra.mxu0 0.0
        %1181 = vmatprep.subr.mxu0 0.0
        %1182 = vmatpush2.msra.mxu0 0.0
        %1183 = vmatprep.subr.mxu0 0.0
        %1184 = vmatpush2.msra.mxu0 0.0
        %1185 = vmatprep.subr.mxu0 0.0
        %1186 = vmatpush2.msra.mxu0 0.0
        %1187 = vmatprep.subr.mxu0 0.0
        %1188 = vmatpush2.msra.mxu0 0.0
        %1189 = vmatprep.subr.mxu0 0.0
        %1190 = vmatpush2.msra.mxu0 0.0
        %1191 = vmatprep.subr.mxu0 0.0
        %1192 = vmatpush2.msra.mxu0 0.0
        %1193 = vmatprep.subr.mxu0 0.0
        %1194 = vmatpush2.msra.mxu0 0.0
        %1195 = vmatprep.subr.mxu0 0.0
        %1196 = vmatpush2.msra.mxu0 0.0
        %1197 = vmatprep.subr.mxu0 0.0
        %1198 = vmatpush2.msra.mxu0 0.0
        %1199 = vmatprep.subr.mxu0 0.0
        %1200 = vmatpush2.msra.mxu0 0.0
        %1201 = vmatprep.subr.mxu0 0.0
        %1202 = vmatpush2.msra.mxu0 0.0
        %1203 = vmatprep.mubr.f32.mxu0 0.0
        %1204 = vmatmul.mubr.f32.gmra.mxu0 %v789
        %v1205 = vpop.f32.mrf.mxu0
        %v1206 = vadd.f32 %v737, %v1205
        %v1207 = vpop.f32.mrf.mxu0
        %v1208 = vadd.f32 %v739, %v1207
        %1209 = vmatprep.mubr.f32.mxu0 0.0
        %1210 = vmatmul.mubr.f32.gmra.mxu0 %v792
        %v1211 = vpop.f32.mrf.mxu0
        %v1212 = vadd.f32 %v743, %v1211
        %v1213 = vpop.f32.mrf.mxu0
        %v1214 = vadd.f32 %v745, %v1213
        %1215 = vmatprep.mubr.f32.mxu0 0.0
        %1216 = vmatmul.mubr.f32.gmra.mxu0 %v795
        %v1217 = vpop.f32.mrf.mxu0
        %v1218 = vadd.f32 %v749, %v1217
        %v1219 = vpop.f32.mrf.mxu0
        %v1220 = vadd.f32 %v751, %v1219
        %1221 = vmatprep.mubr.f32.mxu0 0.0
        %1222 = vmatmul.mubr.f32.gmra.mxu0 %v798
        %v1223 = vpop.f32.mrf.mxu0
        %v1224 = vadd.f32 %v755, %v1223
        %v1225 = vpop.f32.mrf.mxu0
        %v1226 = vadd.f32 %v757, %v1225
        %1227 = vdwg.mxu0
        %v1228 = vmax.f32 %v1206, -1.0
        %v1229 = vmax.f32 %v1208, -1.0
        %v1230 = vmax.f32 %v1212, -1.0
        %v1231 = vmax.f32 %v1214, -1.0
        %v1232 = vmax.f32 %v1218, -1.0
        %v1233 = vmax.f32 %v1220, -1.0
        %v1234 = vmax.f32 %v1224, -1.0
        %v1235 = vmax.f32 %v1226, -1.0
        %v1236 = vmin.f32 %v1228, 1.0
        %v1237 = vmin.f32 %v1229, 1.0
        %v1238 = vmin.f32 %v1230, 1.0
        %v1239 = vmin.f32 %v1231, 1.0
        %v1240 = vmin.f32 %v1232, 1.0
        %v1241 = vmin.f32 %v1233, 1.0
        %v1242 = vmin.f32 %v1234, 1.0
        %v1243 = vmin.f32 %v1235, 1.0
        %v1244 = vsub.f32 %v1206, %v1236
        %v1245 = vsub.f32 %v1208, %v1237
        %v1246 = vsub.f32 %v1212, %v1238
        %v1247 = vsub.f32 %v1214, %v1239
        %v1248 = vsub.f32 %v1218, %v1240
        %v1249 = vsub.f32 %v1220, %v1241
        %v1250 = vsub.f32 %v1224, %v1242
        %v1251 = vsub.f32 %v1226, %v1243
        %v1252 = vld [vmem:[%s7] sm:$0xff]
        %v1253 = vld [vmem:[%s7 + $0x8] sm:$0x1]
        %v1255 = vsel %vm787, %v1252, 0
        %v1258 = vsel %vm787, %v1253, 0
        %1260 = vmatprep.subr.mxu0 0.0
        %1261 = vmatpush1.msra.mxu0 0.0
        %1262 = vmatprep.subr.mxu0 0.0
        %1263 = vmatpush1.msra.mxu0 0.0
        %1264 = vmatprep.subr.mxu0 0.0
        %1265 = vmatpush1.msra.mxu0 0.0
        %1266 = vmatprep.subr.mxu0 0.0
        %1267 = vmatpush1.msra.mxu0 0.0
        %1268 = vmatprep.subr.mxu0 0.0
        %1269 = vmatpush1.msra.mxu0 0.0
        %1270 = vmatprep.subr.mxu0 0.0
        %1271 = vmatpush1.msra.mxu0 0.0
        %1272 = vmatprep.subr.mxu0 0.0
        %1273 = vmatpush1.msra.mxu0 0.0
        %1274 = vmatprep.subr.mxu0 0.0
        %1275 = vmatpush1.msra.mxu0 0.0
        %1276 = vmatprep.subr.mxu0 0.0
        %1277 = vmatpush1.msra.mxu0 0.0
        %1278 = vmatprep.subr.mxu0 0.0
        %1279 = vmatpush1.msra.mxu0 0.0
        %1280 = vmatprep.subr.mxu0 0.0
        %1281 = vmatpush1.msra.mxu0 0.0
        %1282 = vmatprep.subr.mxu0 0.0
        %1283 = vmatpush1.msra.mxu0 0.0
        %1284 = vmatprep.subr.mxu0 %v1251
        %1285 = vmatpush1.msra.mxu0 %v1250
        %1286 = vmatprep.subr.mxu0 %v1249
        %1287 = vmatpush1.msra.mxu0 %v1248
        %1288 = vmatprep.subr.mxu0 %v1247
        %1289 = vmatpush1.msra.mxu0 %v1246
        %1290 = vmatprep.subr.mxu0 %v1245
        %1291 = vmatpush1.msra.mxu0 %v1244
        %1292 = vmatprep.subr.mxu0 0.0
        %1293 = vmatpush2.msra.mxu0 0.0
        %1294 = vmatprep.subr.mxu0 0.0
        %1295 = vmatpush2.msra.mxu0 0.0
        %1296 = vmatprep.subr.mxu0 0.0
        %1297 = vmatpush2.msra.mxu0 0.0
        %1298 = vmatprep.subr.mxu0 0.0
        %1299 = vmatpush2.msra.mxu0 0.0
        %1300 = vmatprep.subr.mxu0 0.0
        %1301 = vmatpush2.msra.mxu0 0.0
        %1302 = vmatprep.subr.mxu0 0.0
        %1303 = vmatpush2.msra.mxu0 0.0
        %1304 = vmatprep.subr.mxu0 0.0
        %1305 = vmatpush2.msra.mxu0 0.0
        %1306 = vmatprep.subr.mxu0 0.0
        %1307 = vmatpush2.msra.mxu0 0.0
        %1308 = vmatprep.subr.mxu0 0.0
        %1309 = vmatpush2.msra.mxu0 0.0
        %1310 = vmatprep.subr.mxu0 0.0
        %1311 = vmatpush2.msra.mxu0 0.0
        %1312 = vmatprep.subr.mxu0 0.0
        %1313 = vmatpush2.msra.mxu0 0.0
        %1314 = vmatprep.subr.mxu0 0.0
        %1315 = vmatpush2.msra.mxu0 0.0
        %1316 = vmatprep.subr.mxu0 0.0
        %1317 = vmatpush2.msra.mxu0 0.0
        %1318 = vmatprep.subr.mxu0 0.0
        %1319 = vmatpush2.msra.mxu0 0.0
        %1320 = vmatprep.subr.mxu0 0.0
        %1321 = vmatpush2.msra.mxu0 0.0
        %1322 = vmatprep.subr.mxu0 0.0
        %1323 = vmatpush2.msra.mxu0 0.0
        %1324 = vmatprep.mubr.f32.mxu0 0.0
        %1325 = vmatmul.mubr.f32.gmra.mxu0 %v1255
        %v1326 = vpop.f32.mrf.mxu0
        %v1327 = vadd.f32 0.0, %v1326
        %v1328 = vpop.f32.mrf.mxu0
        %v1329 = vadd.f32 0.0, %v1328
        %1330 = vmatprep.mubr.f32.mxu0 0.0
        %1331 = vmatmul.mubr.f32.gmra.mxu0 %v1258
        %v1332 = vpop.f32.mrf.mxu0
        %v1333 = vadd.f32 0.0, %v1332
        %v1334 = vpop.f32.mrf.mxu0
        %v1335 = vadd.f32 0.0, %v1334
        %1336 = vdwg.mxu0
        %1341 = vrot.lane.b32.xlu0 %v1327, 17
        %v1342 = vpop.permute.xlu0 %1341
        %1343 = vrot.lane.b32.xlu0 %v1329, 17
        %v1344 = vpop.permute.xlu0 %1343
        %1345 = vrot.lane.b32.xlu0 %v1333, 17
        %v1346 = vpop.permute.xlu0 %1345
        %1347 = vrot.lane.b32.xlu0 %v1335, 17
        %v1348 = vpop.permute.xlu0 %1347
        %v1349 = vsel %vm387, %v1342, %v1344
        %v1350 = vsel %vm387, %v1346, %v1348
        %vm1357 = vcmask 1047688
        %1358 = vst.msk [vmem:[#allocation2] sm:$0xff] %vm1357, %v1342
        %1359 = vst [vmem:[#allocation2 + $0x8] sm:$0xff] %v1349
        %1360 = vst.msk [vmem:[#allocation2 + $0x10] sm:$0xff] %vm387, %v1344
        %vm1361 = vcmask 1040520
        %1362 = vst.msk [vmem:[#allocation2 + $0x18] sm:$0x1] %vm1361, %v1346
        %1363 = vst [vmem:[#allocation2 + $0x20] sm:$0x1] %v1350
        %1364 = vst.msk [vmem:[#allocation2 + $0x28] sm:$0x1] %vm389, %v1348
        %s1365 = sld [smem:[#allocation5]]
        %v1366 = vstv %s1365
        %v1367 = vadd.f32 %v496, %v1366
        %v1368 = vld [vmem:[#allocation6] ss:$8 sm:$0x3]
        %v1369 = vld [vmem:[#allocation2] ss:$8 sm:$0x3]
        %v1370 = vmul.f32 %v1368, %v1369
        %v1371 = vadd.f32 %v1367, %v1370
        %s1372 = scalar_lea.vmem [#allocation6], 1
        %v1373 = vld [vmem:[%s1372] ss:$8 sm:$0x3]
        %s1374 = scalar_lea.vmem [#allocation2], 1
        %v1375 = vld [vmem:[%s1374] ss:$8 sm:$0x7]
        %1377 = vrot.lane.b32.xlu0 %v1375, 127
        %v1378 = vpop.permute.xlu0 %1377
        %v1379 = vrot.slane %v1378, 1
        %v1380 = vsel %vm419, %v1378, %v1379
        %v1382 = vmul.f32 %v1373, %v1380
        %v1383 = vadd.f32 %v1371, %v1382
        %s1384 = scalar_lea.vmem [#allocation6], 2
        %v1385 = vld [vmem:[%s1384] ss:$8 sm:$0x3]
        %s1386 = scalar_lea.vmem [#allocation2], 2
        %v1387 = vld [vmem:[%s1386] ss:$8 sm:$0x7]
        %1389 = vrot.lane.b32.xlu0 %v1387, 126
        %v1390 = vpop.permute.xlu0 %1389
        %v1391 = vrot.slane %v1390, 1
        %v1392 = vsel %vm429, %v1390, %v1391
        %v1394 = vmul.f32 %v1385, %v1392
        %v1395 = vadd.f32 %v1383, %v1394
        %s1396 = scalar_lea.vmem [#allocation6], 3
        %v1397 = vld [vmem:[%s1396] ss:$8 sm:$0x3]
        %s1398 = scalar_lea.vmem [#allocation2], 3
        %v1399 = vld [vmem:[%s1398] ss:$8 sm:$0x7]
        %1401 = vrot.lane.b32.xlu0 %v1399, 112
        %v1402 = vpop.permute.xlu0 %1401
        %v1403 = vrot.slane %v1402, 1
        %v1404 = vsel %vm439, %v1402, %v1403
        %v1406 = vmul.f32 %v1397, %v1404
        %v1407 = vadd.f32 %v1395, %v1406
        %s1408 = scalar_lea.vmem [#allocation6], 4
        %v1409 = vld [vmem:[%s1408] ss:$8 sm:$0x3]
        %s1410 = scalar_lea.vmem [#allocation2], 4
        %v1411 = vld [vmem:[%s1410] ss:$8 sm:$0x7]
        %1413 = vrot.lane.b32.xlu0 %v1411, 111
        %v1414 = vpop.permute.xlu0 %1413
        %v1415 = vrot.slane %v1414, 1
        %v1416 = vsel %vm449, %v1414, %v1415
        %v1418 = vmul.f32 %v1409, %v1416
        %v1419 = vadd.f32 %v1407, %v1418
        %s1420 = scalar_lea.vmem [#allocation6], 5
        %v1421 = vld [vmem:[%s1420] ss:$8 sm:$0x3]
        %s1422 = scalar_lea.vmem [#allocation2], 5
        %v1423 = vld [vmem:[%s1422] ss:$8 sm:$0x7]
        %1425 = vrot.lane.b32.xlu0 %v1423, 110
        %v1426 = vpop.permute.xlu0 %1425
        %v1427 = vrot.slane %v1426, 1
        %v1428 = vsel %vm459, %v1426, %v1427
        %v1430 = vmul.f32 %v1421, %v1428
        %v1431 = vadd.f32 %v1419, %v1430
        %s1432 = scalar_lea.vmem [#allocation6], 6
        %v1433 = vld [vmem:[%s1432] ss:$8 sm:$0x3]
        %s1434 = scalar_lea.vmem [#allocation2], 6
        %v1435 = vld [vmem:[%s1434] ss:$8 sm:$0x7]
        %1437 = vrot.lane.b32.xlu0 %v1435, 96
        %v1438 = vpop.permute.xlu0 %1437
        %v1439 = vrot.slane %v1438, 1
        %v1440 = vsel %vm469, %v1438, %v1439
        %v1442 = vmul.f32 %v1433, %v1440
        %v1443 = vadd.f32 %v1431, %v1442
        %s1444 = scalar_lea.vmem [#allocation6], 7
        %v1445 = vld [vmem:[%s1444] ss:$8 sm:$0x3]
        %s1446 = scalar_lea.vmem [#allocation2], 7
        %v1447 = vld [vmem:[%s1446] ss:$8 sm:$0x7]
        %1449 = vrot.lane.b32.xlu0 %v1447, 95
        %v1450 = vpop.permute.xlu0 %1449
        %v1451 = vrot.slane %v1450, 1
        %v1452 = vsel %vm479, %v1450, %v1451
        %v1454 = vmul.f32 %v1445, %v1452
        %v1455 = vadd.f32 %v1443, %v1454
        %s1456 = scalar_lea.vmem [#allocation6], 16
        %v1457 = vld [vmem:[%s1456] ss:$8 sm:$0x3]
        %s1458 = scalar_lea.vmem [#allocation2], 24
        %v1459 = vld [vmem:[%s1458] ss:$8 sm:$0x7]
        %1461 = vrot.lane.b32.xlu0 %v1459, 94
        %v1462 = vpop.permute.xlu0 %1461
        %v1463 = vrot.slane %v1462, 1
        %v1464 = vsel %vm489, %v1462, %v1463
        %v1466 = vmul.f32 %v1457, %v1464
        %v1467 = vadd.f32 %v1455, %v1466
        %1468 = vst.msk [vmem:[%s382] sm:$0x3] %vm511, %v1467
        %s1469 = sand.u32 %s251, 1
        %s1470 = scalar_lea.sflag [#allocation8], %s1469
        %s1471 = sand.u32 %s251, 1
        %s1472 = smul.addr %s1471, 2
        %s1473 = scalar_lea.vmem [#allocation11], %s1472
        // Predicated region
        $region69: #{tpu_custom_call.1} parent=59 // pred_check
          %p1474 = pneg %p261
        $region70: #{tpu_custom_call.1} parent=59 // pred_check_branch
          %1476 = sbr.rel (%p1474) target = $region72
        $region71: #{tpu_custom_call.1} parent=59 // pred_region
          %s1478 = ssub.s32 32, 32
          %1479 = vsyncadd %s1470, %s1478
          %s1480 = smul.addr %s28, 2
          %s1481 = smul.addr %s1480, 16
          %s1482 = scalar_lea.hbm %s10, %s1481
          %s1484 = sshll.u32 %s1473, 4
          %s1485 = int_to_ptr.vmem [resolvable:$true] %s1484
          %1487 = dma.vmem_to_hbm [thread:$0]  %s1485, 32, %s1482, %s1470
        $region72: #{tpu_custom_call.1} parent=59 // pred_fallthru
          _
      $region60: #{tpu_custom_call.1} parent=5 // pred_fallthru
        _
      %p1488 = scmp.le.s32.totalorder 2, %s23
      // Predicated region
      $region73: #{tpu_custom_call.1} parent=5 // pred_check
        %p1489 = pneg %p1488
      $region74: #{tpu_custom_call.1} parent=5 // pred_check_branch
        %1491 = sbr.rel (%p1489) target = $region76
      $region75: #{tpu_custom_call.1} parent=5 // pred_region
        %s1492 = ssub.s32 %s23, 2
        // Predicated region
        $region77: #{tpu_custom_call.1} parent=75 // pred_check
          %p1493 = pneg %p267
        $region78: #{tpu_custom_call.1} parent=75 // pred_check_branch
          %1495 = sbr.rel (%p1493) target = $region80
        $region79: #{tpu_custom_call.1} parent=75 // pred_region
          %s1496 = sand.u32 %s252, 1
          %s1497 = scalar_lea.sflag [#allocation8], %s1496
          %s1498 = sand.u32 %s252, 1
          %s1499 = smul.addr %s1498, 2
          %s1500 = scalar_lea.vmem [#allocation11], %s1499
          %1501 = dma.done %s1497, 32
        $region80: #{tpu_custom_call.1} parent=75 // pred_fallthru
          _
      $region76: #{tpu_custom_call.1} parent=5 // pred_fallthru
        _
    $region6: #{tpu_custom_call.1} parent=1 // loop_footer
      %s27 = sadd.s32 1, %s23
    $region7: #{tpu_custom_call.1} parent=1 // loop_footer_branch
      %22 = sbr.rel target = $region3
    $region8: #{tpu_custom_call.1} parent=1 // loop_exit
      _
    %1502 = vsyncpa [#allocation7], 1
    %s1503 = scalar_lea.sflag [#allocation7], 1
    %1504 = vsyncpa %s1503, 1
    %1505 = vsyncpa [#allocation10], 1
    %1506 = vsyncpa [#allocation8], 1
    %s1507 = scalar_lea.sflag [#allocation8], 1
    %1508 = vsyncpa %s1507, 1

</llo_original>
